<compile_context>
chip_gen: v7x
topology: tpu7x:2x2x1
jax: 0.10.0
libtpu: 0.0.40
codegen_flags: <defaults>
</compile_context>

<pallas_src>
import functools

import jax
import jax.numpy as jnp
from jax.experimental import pallas as pl
from jax.experimental.pallas import tpu as pltpu

LANE = 128


def dann_kernel(x_ref,
                w0_ref, b0_ref, w1_ref, b1_ref, w2_ref, b2_ref,
                wz_ref, bz_ref, w4_ref, b4_ref, w7_ref, b7_ref,
                wf_ref, bf_ref,
                out_ref):
    def linear(h, w_ref, b_ref, relu=True):
        # bf16 operands into the MXU, f32 accumulation; bias/ReLU on the VPU in f32.
        y = jnp.dot(h.astype(jnp.bfloat16), w_ref[...],
                    preferred_element_type=jnp.float32)
        y = y + b_ref[...]
        return jnp.maximum(y, 0.0) if relu else y

    x = x_ref[...]                                   # (TB, 128) f32, lanes >= input_dim are zero

    # --- encoder -> features z ---
    h1 = linear(x, w0_ref, b0_ref)                   # (TB, 512)
    h2 = linear(h1, w1_ref, b1_ref)                  # (TB, 256)
    z = linear(h2, w2_ref, b2_ref)                   # (TB, hidden)

    # --- fused z fan-out: [decoder L0 (256) | classifier L0 (128) | discr L0 (64)] ---
    fz = linear(z, wz_ref, bz_ref)                   # (TB, 448), ReLU applies to all three
    d1 = fz[:, 0:256]
    c1 = fz[:, 256:384]
    g1 = fz[:, 384:448]

    # --- middle layers ---
    d2 = linear(d1, w4_ref, b4_ref)                  # (TB, 512)  decoder
    c2 = linear(c1, w7_ref, b7_ref)                  # (TB, 64)   classifier

    # --- fused heads: block-diagonal [640, 128] weight produces the packed
    #     lane-dense output slab [recon | class | domain | zeros] directly ---
    cat = jnp.concatenate([d2, c2, g1], axis=1)      # (TB, 640)
    out_ref[...] = linear(cat, wf_ref, bf_ref, relu=False)  # (TB, 128)


def prepare_kernel_params(params, input_dim, num_classes):
    """params: 11 (W [in,out], b [1,out]) f32 pairs in PyTorch layer order."""
    (W0, b0), (W1, b1), (W2, b2), (W3, b3), (W4, b4), (W5, b5), \
        (W6, b6), (W7, b7), (W8, b8), (W9, b9), (W10, b10) = params

    # Encoder input weight: pad rows to 128 lanes (input is zero-padded to match).
    W0p = jnp.zeros((LANE, W0.shape[1]), jnp.float32).at[:input_dim].set(W0)

    # Fused z fan-out weight: [hidden, 256 + 128 + 64].
    Wz = jnp.concatenate([W3, W6, W9], axis=1)
    bz = jnp.concatenate([b3, b6, b9], axis=1)

    # Fused head weight: rows = [d2(512) | c2(64) | g1(64)], cols = 128 lanes
    # packed as [recon(input_dim) | class(num_classes) | domain(2) | zero pad].
    n_out = input_dim + num_classes + 2
    assert n_out <= LANE
    Wf = jnp.zeros((512 + 64 + 64, LANE), jnp.float32)
    Wf = Wf.at[0:512, 0:input_dim].set(W5)
    Wf = Wf.at[512:576, input_dim:input_dim + num_classes].set(W8)
    Wf = Wf.at[576:640, input_dim + num_classes:n_out].set(W10)
    bf = jnp.zeros((1, LANE), jnp.float32)
    bf = bf.at[:, 0:input_dim].set(b5[0])
    bf = bf.at[:, input_dim:input_dim + num_classes].set(b8[0])
    bf = bf.at[:, input_dim + num_classes:n_out].set(b10[0])

    weights = [W0p, W1, W2, Wz, W4, W7, Wf]
    biases = [b0, b1, b2, bz, b4, b7, bf]
    weights = [w.astype(jnp.bfloat16) for w in weights]   # MXU-native, half the VMEM
    flat = []
    for w, b in zip(weights, biases):
        flat += [w, b]
    return flat


@functools.partial(jax.jit, static_argnames=("num_classes", "tb"))
def dann_forward(x, params, *, num_classes, tb=256):
    B, input_dim = x.shape
    flat = prepare_kernel_params(params, input_dim, num_classes)

    # Row tile: don't over-allocate for tiny batches, keep sublane-aligned.
    tb = min(tb, max(8, ((B + 7) // 8) * 8))
    Bp = ((B + tb - 1) // tb) * tb
    xp = jnp.zeros((Bp, LANE), jnp.float32).at[:B, :input_dim].set(x)

    grid = (Bp // tb,)
    row_spec = pl.BlockSpec((tb, LANE), lambda i: (i, 0))
    # Weights/biases: full-array blocks with a constant index_map -> resident in VMEM.
    in_specs = [row_spec] + [pl.BlockSpec(a.shape, lambda i: (0, 0)) for a in flat]

    slab = pl.pallas_call(
        dann_kernel,
        grid=grid,
        out_shape=jax.ShapeDtypeStruct((Bp, LANE), jnp.float32),
        in_specs=in_specs,
        out_specs=row_spec,
        compiler_params=pltpu.CompilerParams(dimension_semantics=("parallel",)),
    )(xp, *flat)

    # Wrapper-side slicing of the packed slab (free layout plumbing).
    recon = slab[:B, 0:input_dim]
    class_out = slab[:B, input_dim:input_dim + num_classes]
    dom_out = slab[:B, input_dim + num_classes:input_dim + num_classes + 2]
    return class_out, dom_out, recon


def dann_reference(x, params):
    """Plain-JAX f32 reference of the PyTorch forward (eval mode)."""
    def lin(h, i, relu):
        W, b = params[i]
        y = h @ W + b
        return jnp.maximum(y, 0.0) if relu else y
    h = lin(x, 0, True); h = lin(h, 1, True); z = lin(h, 2, True)
    d = lin(z, 3, True); d = lin(d, 4, True); recon = lin(d, 5, False)
    c = lin(z, 6, True); c = lin(c, 7, True); cls = lin(c, 8, False)
    g = lin(z, 9, True); dom = lin(g, 10, False)
    return cls, dom, recon


def init_linear(key, fan_in, fan_out):
    # PyTorch nn.Linear default: U(-1/sqrt(fan_in), 1/sqrt(fan_in))
    kw, kb = jax.random.split(key)
    bound = 1.0 / (fan_in ** 0.5)
    W = jax.random.uniform(kw, (fan_in, fan_out), jnp.float32, -bound, bound)
    b = jax.random.uniform(kb, (1, fan_out), jnp.float32, -bound, bound)
    return W, b


def make_params(key, input_dim, hidden_dim, num_classes):
    dims = [
        # encoder
        (input_dim, 512), (512, 256), (256, hidden_dim),
        # decoder
        (hidden_dim, 256), (256, 512), (512, input_dim),
        # label classifier
        (hidden_dim, 128), (128, 64), (64, num_classes),
        # domain discriminator
        (hidden_dim, 64), (64, 2),
    ]
    keys = jax.random.split(key, len(dims))
    return [init_linear(k, fi, fo) for k, (fi, fo) in zip(keys, dims)]


if __name__ == "__main__":
    input_dim = 10
    hidden_dim = 32
    num_classes = 3
    batch = 8
    alpha = 0.5  # TODO(synk): GRL alpha only scales the backward pass; identity in forward.

    root = jax.random.PRNGKey(0)
    kx, kp = jax.random.split(root)
    x = jax.random.normal(kx, (batch, input_dim), jnp.float32)
    params = make_params(kp, input_dim, hidden_dim, num_classes)

    class_out, dom_out, x_recon = dann_forward(x, params, num_classes=num_classes)
    jax.block_until_ready((class_out, dom_out, x_recon))

    assert class_out.shape == (batch, num_classes)
    assert dom_out.shape == (batch, 2)
    assert x_recon.shape == (batch, input_dim)

    # Loose tolerance vs. f32 reference (kernel uses bf16 weights at the MXU).
    ref_cls, ref_dom, ref_rec = dann_reference(x, params)
    for got, ref in ((class_out, ref_cls), (dom_out, ref_dom), (x_recon, ref_rec)):
        err = float(jnp.max(jnp.abs(got - ref)))
        assert jnp.allclose(got, ref, rtol=5e-2, atol=5e-2), err

    print("KERNEL_OK")
</pallas_src>

<mosaic_0001>
module attributes {stable_mosaic.version = 11 : i64} {
  func.func @dann_kernel(%arg0: i32, %arg1: memref<8x128xf32, #tpu.memory_space<vmem>>, %arg2: memref<128x512xbf16, #tpu.memory_space<vmem>>, %arg3: memref<1x512xf32, #tpu.memory_space<vmem>>, %arg4: memref<512x256xbf16, #tpu.memory_space<vmem>>, %arg5: memref<1x256xf32, #tpu.memory_space<vmem>>, %arg6: memref<256x32xbf16, #tpu.memory_space<vmem>>, %arg7: memref<1x32xf32, #tpu.memory_space<vmem>>, %arg8: memref<32x448xbf16, #tpu.memory_space<vmem>>, %arg9: memref<1x448xf32, #tpu.memory_space<vmem>>, %arg10: memref<256x512xbf16, #tpu.memory_space<vmem>>, %arg11: memref<1x512xf32, #tpu.memory_space<vmem>>, %arg12: memref<128x64xbf16, #tpu.memory_space<vmem>>, %arg13: memref<1x64xf32, #tpu.memory_space<vmem>>, %arg14: memref<640x128xbf16, #tpu.memory_space<vmem>>, %arg15: memref<1x128xf32, #tpu.memory_space<vmem>>, %arg16: memref<8x128xf32, #tpu.memory_space<vmem>>) attributes {dimension_semantics = [#tpu.dimension_semantics<parallel>], iteration_bounds = array<i64: 1>, scalar_prefetch = 0 : i64, scratch_operands = 0 : i64, tpu.core_type = #tpu.core_type<tc>, window_params = [{transform_indices = @transform_0, window_bounds = array<i64: 8, 128>}, {pipeline_mode = #tpu.pipeline_mode<synchronous>, transform_indices = @transform_1, window_bounds = array<i64: 128, 512>}, {pipeline_mode = #tpu.pipeline_mode<synchronous>, transform_indices = @transform_2, window_bounds = array<i64: 1, 512>}, {pipeline_mode = #tpu.pipeline_mode<synchronous>, transform_indices = @transform_3, window_bounds = array<i64: 512, 256>}, {pipeline_mode = #tpu.pipeline_mode<synchronous>, transform_indices = @transform_4, window_bounds = array<i64: 1, 256>}, {pipeline_mode = #tpu.pipeline_mode<synchronous>, transform_indices = @transform_5, window_bounds = array<i64: 256, 32>}, {pipeline_mode = #tpu.pipeline_mode<synchronous>, transform_indices = @transform_6, window_bounds = array<i64: 1, 32>}, {pipeline_mode = #tpu.pipeline_mode<synchronous>, transform_indices = @transform_7, window_bounds = array<i64: 32, 448>}, {pipeline_mode = #tpu.pipeline_mode<synchronous>, transform_indices = @transform_8, window_bounds = array<i64: 1, 448>}, {pipeline_mode = #tpu.pipeline_mode<synchronous>, transform_indices = @transform_9, window_bounds = array<i64: 256, 512>}, {pipeline_mode = #tpu.pipeline_mode<synchronous>, transform_indices = @transform_10, window_bounds = array<i64: 1, 512>}, {pipeline_mode = #tpu.pipeline_mode<synchronous>, transform_indices = @transform_11, window_bounds = array<i64: 128, 64>}, {pipeline_mode = #tpu.pipeline_mode<synchronous>, transform_indices = @transform_12, window_bounds = array<i64: 1, 64>}, {pipeline_mode = #tpu.pipeline_mode<synchronous>, transform_indices = @transform_13, window_bounds = array<i64: 640, 128>}, {pipeline_mode = #tpu.pipeline_mode<synchronous>, transform_indices = @transform_14, window_bounds = array<i64: 1, 128>}, {transform_indices = @transform_15, window_bounds = array<i64: 8, 128>}]} {
    %c0 = arith.constant 0 : index
    %c0_0 = arith.constant 0 : index
    %0 = vector.load %arg1[%c0, %c0_0] : memref<8x128xf32, #tpu.memory_space<vmem>>, vector<8x128xf32>
    %1 = arith.truncf %0 : vector<8x128xf32> to vector<8x128xbf16>
    %c0_1 = arith.constant 0 : index
    %c0_2 = arith.constant 0 : index
    %2 = vector.load %arg2[%c0_1, %c0_2] : memref<128x512xbf16, #tpu.memory_space<vmem>>, vector<128x512xbf16>
    %cst = arith.constant dense<0.000000e+00> : vector<8x512xf32>
    %3 = tpu.matmul %1, %2, %cst {dimension_numbers = #tpu.dot_dimension_numbers<[1], [0], [0], [1], [0, 0, 1, 1], [], []>} : vector<8x128xbf16>, vector<128x512xbf16>, vector<8x512xf32> -> vector<8x512xf32>
    %c0_3 = arith.constant 0 : index
    %c0_4 = arith.constant 0 : index
    %4 = vector.load %arg3[%c0_3, %c0_4] : memref<1x512xf32, #tpu.memory_space<vmem>>, vector<1x512xf32>
    %5 = vector.broadcast %4 : vector<1x512xf32> to vector<8x512xf32>
    %6 = arith.addf %3, %5 : vector<8x512xf32>
    %cst_5 = arith.constant 0.000000e+00 : f32
    %7 = vector.broadcast %cst_5 : f32 to vector<8x512xf32>
    %8 = arith.maximumf %6, %7 : vector<8x512xf32>
    %9 = arith.truncf %8 : vector<8x512xf32> to vector<8x512xbf16>
    %c0_6 = arith.constant 0 : index
    %c0_7 = arith.constant 0 : index
    %10 = vector.load %arg4[%c0_6, %c0_7] : memref<512x256xbf16, #tpu.memory_space<vmem>>, vector<512x256xbf16>
    %cst_8 = arith.constant dense<0.000000e+00> : vector<8x256xf32>
    %11 = tpu.matmul %9, %10, %cst_8 {dimension_numbers = #tpu.dot_dimension_numbers<[1], [0], [0], [1], [0, 0, 1, 1], [], []>} : vector<8x512xbf16>, vector<512x256xbf16>, vector<8x256xf32> -> vector<8x256xf32>
    %c0_9 = arith.constant 0 : index
    %c0_10 = arith.constant 0 : index
    %12 = vector.load %arg5[%c0_9, %c0_10] : memref<1x256xf32, #tpu.memory_space<vmem>>, vector<1x256xf32>
    %13 = vector.broadcast %12 : vector<1x256xf32> to vector<8x256xf32>
    %14 = arith.addf %11, %13 : vector<8x256xf32>
    %cst_11 = arith.constant 0.000000e+00 : f32
    %15 = vector.broadcast %cst_11 : f32 to vector<8x256xf32>
    %16 = arith.maximumf %14, %15 : vector<8x256xf32>
    %17 = arith.truncf %16 : vector<8x256xf32> to vector<8x256xbf16>
    %c0_12 = arith.constant 0 : index
    %c0_13 = arith.constant 0 : index
    %18 = vector.load %arg6[%c0_12, %c0_13] : memref<256x32xbf16, #tpu.memory_space<vmem>>, vector<256x32xbf16>
    %cst_14 = arith.constant dense<0.000000e+00> : vector<8x32xf32>
    %19 = tpu.matmul %17, %18, %cst_14 {dimension_numbers = #tpu.dot_dimension_numbers<[1], [0], [0], [1], [0, 0, 1, 1], [], []>} : vector<8x256xbf16>, vector<256x32xbf16>, vector<8x32xf32> -> vector<8x32xf32>
    %c0_15 = arith.constant 0 : index
    %c0_16 = arith.constant 0 : index
    %20 = vector.load %arg7[%c0_15, %c0_16] : memref<1x32xf32, #tpu.memory_space<vmem>>, vector<1x32xf32>
    %21 = vector.broadcast %20 : vector<1x32xf32> to vector<8x32xf32>
    %22 = arith.addf %19, %21 : vector<8x32xf32>
    %cst_17 = arith.constant 0.000000e+00 : f32
    %23 = vector.broadcast %cst_17 : f32 to vector<8x32xf32>
    %24 = arith.maximumf %22, %23 : vector<8x32xf32>
    %25 = arith.truncf %24 : vector<8x32xf32> to vector<8x32xbf16>
    %c0_18 = arith.constant 0 : index
    %c0_19 = arith.constant 0 : index
    %26 = vector.load %arg8[%c0_18, %c0_19] : memref<32x448xbf16, #tpu.memory_space<vmem>>, vector<32x448xbf16>
    %cst_20 = arith.constant dense<0.000000e+00> : vector<8x448xf32>
    %27 = tpu.matmul %25, %26, %cst_20 {dimension_numbers = #tpu.dot_dimension_numbers<[1], [0], [0], [1], [0, 0, 1, 1], [], []>} : vector<8x32xbf16>, vector<32x448xbf16>, vector<8x448xf32> -> vector<8x448xf32>
    %c0_21 = arith.constant 0 : index
    %c0_22 = arith.constant 0 : index
    %28 = vector.load %arg9[%c0_21, %c0_22] : memref<1x448xf32, #tpu.memory_space<vmem>>, vector<1x448xf32>
    %29 = vector.broadcast %28 : vector<1x448xf32> to vector<8x448xf32>
    %30 = arith.addf %27, %29 : vector<8x448xf32>
    %cst_23 = arith.constant 0.000000e+00 : f32
    %31 = vector.broadcast %cst_23 : f32 to vector<8x448xf32>
    %32 = arith.maximumf %30, %31 : vector<8x448xf32>
    %33 = vector.extract_strided_slice %32 {offsets = [0, 0], sizes = [8, 256], strides = [1, 1]} : vector<8x448xf32> to vector<8x256xf32>
    %34 = vector.extract_strided_slice %32 {offsets = [0, 256], sizes = [8, 128], strides = [1, 1]} : vector<8x448xf32> to vector<8x128xf32>
    %35 = vector.extract_strided_slice %32 {offsets = [0, 384], sizes = [8, 64], strides = [1, 1]} : vector<8x448xf32> to vector<8x64xf32>
    %36 = arith.truncf %33 : vector<8x256xf32> to vector<8x256xbf16>
    %c0_24 = arith.constant 0 : index
    %c0_25 = arith.constant 0 : index
    %37 = vector.load %arg10[%c0_24, %c0_25] : memref<256x512xbf16, #tpu.memory_space<vmem>>, vector<256x512xbf16>
    %cst_26 = arith.constant dense<0.000000e+00> : vector<8x512xf32>
    %38 = tpu.matmul %36, %37, %cst_26 {dimension_numbers = #tpu.dot_dimension_numbers<[1], [0], [0], [1], [0, 0, 1, 1], [], []>} : vector<8x256xbf16>, vector<256x512xbf16>, vector<8x512xf32> -> vector<8x512xf32>
    %c0_27 = arith.constant 0 : index
    %c0_28 = arith.constant 0 : index
    %39 = vector.load %arg11[%c0_27, %c0_28] : memref<1x512xf32, #tpu.memory_space<vmem>>, vector<1x512xf32>
    %40 = vector.broadcast %39 : vector<1x512xf32> to vector<8x512xf32>
    %41 = arith.addf %38, %40 : vector<8x512xf32>
    %cst_29 = arith.constant 0.000000e+00 : f32
    %42 = vector.broadcast %cst_29 : f32 to vector<8x512xf32>
    %43 = arith.maximumf %41, %42 : vector<8x512xf32>
    %44 = arith.truncf %34 : vector<8x128xf32> to vector<8x128xbf16>
    %c0_30 = arith.constant 0 : index
    %c0_31 = arith.constant 0 : index
    %45 = vector.load %arg12[%c0_30, %c0_31] : memref<128x64xbf16, #tpu.memory_space<vmem>>, vector<128x64xbf16>
    %cst_32 = arith.constant dense<0.000000e+00> : vector<8x64xf32>
    %46 = tpu.matmul %44, %45, %cst_32 {dimension_numbers = #tpu.dot_dimension_numbers<[1], [0], [0], [1], [0, 0, 1, 1], [], []>} : vector<8x128xbf16>, vector<128x64xbf16>, vector<8x64xf32> -> vector<8x64xf32>
    %c0_33 = arith.constant 0 : index
    %c0_34 = arith.constant 0 : index
    %47 = vector.load %arg13[%c0_33, %c0_34] : memref<1x64xf32, #tpu.memory_space<vmem>>, vector<1x64xf32>
    %48 = vector.broadcast %47 : vector<1x64xf32> to vector<8x64xf32>
    %49 = arith.addf %46, %48 : vector<8x64xf32>
    %cst_35 = arith.constant 0.000000e+00 : f32
    %50 = vector.broadcast %cst_35 : f32 to vector<8x64xf32>
    %51 = arith.maximumf %49, %50 : vector<8x64xf32>
    %52 = tpu.concatenate %43, %51, %35 in 1 : vector<8x512xf32>, vector<8x64xf32>, vector<8x64xf32> -> vector<8x640xf32>
    %53 = arith.truncf %52 : vector<8x640xf32> to vector<8x640xbf16>
    %c0_36 = arith.constant 0 : index
    %c0_37 = arith.constant 0 : index
    %54 = vector.load %arg14[%c0_36, %c0_37] : memref<640x128xbf16, #tpu.memory_space<vmem>>, vector<640x128xbf16>
    %cst_38 = arith.constant dense<0.000000e+00> : vector<8x128xf32>
    %55 = tpu.matmul %53, %54, %cst_38 {dimension_numbers = #tpu.dot_dimension_numbers<[1], [0], [0], [1], [0, 0, 1, 1], [], []>} : vector<8x640xbf16>, vector<640x128xbf16>, vector<8x128xf32> -> vector<8x128xf32>
    %c0_39 = arith.constant 0 : index
    %c0_40 = arith.constant 0 : index
    %56 = vector.load %arg15[%c0_39, %c0_40] : memref<1x128xf32, #tpu.memory_space<vmem>>, vector<1x128xf32>
    %57 = vector.broadcast %56 : vector<1x128xf32> to vector<8x128xf32>
    %58 = arith.addf %55, %57 : vector<8x128xf32>
    %c0_41 = arith.constant 0 : index
    %c0_42 = arith.constant 0 : index
    %59 = vector.load %arg16[%c0_41, %c0_42] : memref<8x128xf32, #tpu.memory_space<vmem>>, vector<8x128xf32>
    tpu.vector_store %arg16[%c0_41, %c0_42], %58 {strides = array<i32>} : memref<8x128xf32, #tpu.memory_space<vmem>>, vector<8x128xf32>,
    return
  }
  func.func @transform_0(%arg0: i32) -> (i32, i32) {
    %c0_i32 = arith.constant 0 : i32
    %c0_i32_0 = arith.constant 0 : i32
    return %arg0, %c0_i32 : i32, i32
  }
  func.func @transform_1(%arg0: i32) -> (i32, i32) {
    %c0_i32 = arith.constant 0 : i32
    %c0_i32_0 = arith.constant 0 : i32
    %c0_i32_1 = arith.constant 0 : i32
    return %c0_i32, %c0_i32_0 : i32, i32
  }
  func.func @transform_2(%arg0: i32) -> (i32, i32) {
    %c0_i32 = arith.constant 0 : i32
    %c0_i32_0 = arith.constant 0 : i32
    %c0_i32_1 = arith.constant 0 : i32
    return %c0_i32, %c0_i32_0 : i32, i32
  }
  func.func @transform_3(%arg0: i32) -> (i32, i32) {
    %c0_i32 = arith.constant 0 : i32
    %c0_i32_0 = arith.constant 0 : i32
    %c0_i32_1 = arith.constant 0 : i32
    return %c0_i32, %c0_i32_0 : i32, i32
  }
  func.func @transform_4(%arg0: i32) -> (i32, i32) {
    %c0_i32 = arith.constant 0 : i32
    %c0_i32_0 = arith.constant 0 : i32
    %c0_i32_1 = arith.constant 0 : i32
    return %c0_i32, %c0_i32_0 : i32, i32
  }
  func.func @transform_5(%arg0: i32) -> (i32, i32) {
    %c0_i32 = arith.constant 0 : i32
    %c0_i32_0 = arith.constant 0 : i32
    %c0_i32_1 = arith.constant 0 : i32
    return %c0_i32, %c0_i32_0 : i32, i32
  }
  func.func @transform_6(%arg0: i32) -> (i32, i32) {
    %c0_i32 = arith.constant 0 : i32
    %c0_i32_0 = arith.constant 0 : i32
    %c0_i32_1 = arith.constant 0 : i32
    return %c0_i32, %c0_i32_0 : i32, i32
  }
  func.func @transform_7(%arg0: i32) -> (i32, i32) {
    %c0_i32 = arith.constant 0 : i32
    %c0_i32_0 = arith.constant 0 : i32
    %c0_i32_1 = arith.constant 0 : i32
    return %c0_i32, %c0_i32_0 : i32, i32
  }
  func.func @transform_8(%arg0: i32) -> (i32, i32) {
    %c0_i32 = arith.constant 0 : i32
    %c0_i32_0 = arith.constant 0 : i32
    %c0_i32_1 = arith.constant 0 : i32
    return %c0_i32, %c0_i32_0 : i32, i32
  }
  func.func @transform_9(%arg0: i32) -> (i32, i32) {
    %c0_i32 = arith.constant 0 : i32
    %c0_i32_0 = arith.constant 0 : i32
    %c0_i32_1 = arith.constant 0 : i32
    return %c0_i32, %c0_i32_0 : i32, i32
  }
  func.func @transform_10(%arg0: i32) -> (i32, i32) {
    %c0_i32 = arith.constant 0 : i32
    %c0_i32_0 = arith.constant 0 : i32
    %c0_i32_1 = arith.constant 0 : i32
    return %c0_i32, %c0_i32_0 : i32, i32
  }
  func.func @transform_11(%arg0: i32) -> (i32, i32) {
    %c0_i32 = arith.constant 0 : i32
    %c0_i32_0 = arith.constant 0 : i32
    %c0_i32_1 = arith.constant 0 : i32
    return %c0_i32, %c0_i32_0 : i32, i32
  }
  func.func @transform_12(%arg0: i32) -> (i32, i32) {
    %c0_i32 = arith.constant 0 : i32
    %c0_i32_0 = arith.constant 0 : i32
    %c0_i32_1 = arith.constant 0 : i32
    return %c0_i32, %c0_i32_0 : i32, i32
  }
  func.func @transform_13(%arg0: i32) -> (i32, i32) {
    %c0_i32 = arith.constant 0 : i32
    %c0_i32_0 = arith.constant 0 : i32
    %c0_i32_1 = arith.constant 0 : i32
    return %c0_i32, %c0_i32_0 : i32, i32
  }
  func.func @transform_14(%arg0: i32) -> (i32, i32) {
    %c0_i32 = arith.constant 0 : i32
    %c0_i32_0 = arith.constant 0 : i32
    %c0_i32_1 = arith.constant 0 : i32
    return %c0_i32, %c0_i32_0 : i32, i32
  }
  func.func @transform_15(%arg0: i32) -> (i32, i32) {
    %c0_i32 = arith.constant 0 : i32
    %c0_i32_0 = arith.constant 0 : i32
    return %arg0, %c0_i32 : i32, i32
  }
}

</mosaic_0001>

<llo_original>
// kernel: dann_forward.1
$region0: #{dann_forward.1}
  #allocation0 [shape = 'u32[]', space=smem, size = 0x4, offset = 0x4, fixed_abs, tag = 'smem constant byte address 0x4 - core index']
  #allocation1 [shape = 'u32[144,128]{1,0:T(1,128)}', space=vmem, size = 0x12000, scoped, tag = 'internal scratch']
  %s0 = inlined_call_operand.vmem [shape: f32[8,128], index: 0, kind: input, shape index: {}]
  %s1 = inlined_call_operand.vmem [shape: bf16[128,512], index: 1, kind: input, shape index: {}]
  %s2 = inlined_call_operand.vmem [shape: f32[1,512], index: 2, kind: input, shape index: {}]
  %s3 = inlined_call_operand.vmem [shape: bf16[512,256], index: 3, kind: input, shape index: {}]
  %s4 = inlined_call_operand.vmem [shape: f32[1,256], index: 4, kind: input, shape index: {}]
  %s5 = inlined_call_operand.vmem [shape: bf16[256,32], index: 5, kind: input, shape index: {}]
  %s6 = inlined_call_operand.vmem [shape: f32[1,32], index: 6, kind: input, shape index: {}]
  %s7 = inlined_call_operand.vmem [shape: bf16[32,448], index: 7, kind: input, shape index: {}]
  %s8 = inlined_call_operand.vmem [shape: f32[1,448], index: 8, kind: input, shape index: {}]
  %s9 = inlined_call_operand.vmem [shape: bf16[256,512], index: 9, kind: input, shape index: {}]
  %s10 = inlined_call_operand.vmem [shape: f32[1,512], index: 10, kind: input, shape index: {}]
  %s11 = inlined_call_operand.vmem [shape: bf16[128,64], index: 11, kind: input, shape index: {}]
  %s12 = inlined_call_operand.vmem [shape: f32[1,64], index: 12, kind: input, shape index: {}]
  %s13 = inlined_call_operand.vmem [shape: bf16[640,128], index: 13, kind: input, shape index: {}]
  %s14 = inlined_call_operand.vmem [shape: f32[1,128], index: 14, kind: input, shape index: {}]
  %s15 = inlined_call_operand.vmem [shape: f32[8,128], index: 15, kind: output, shape index: {}]
  %s16 = sld [smem:[#allocation0]]
  $region70: #{dann_forward.1} parent=0
    _
  %s18 = ssub.s32 1, %s16
  %s19 = scalar_select 0, %s18, %s16
  // Predicated region
  $region2: #{dann_forward.1} parent=0 // pred_check
    _
  $region3: #{dann_forward.1} parent=0 // pred_check_branch
    %21 = sbr.rel (0) target = $region5
  $region4: #{dann_forward.1} parent=0 // pred_region
    _
  $region5: #{dann_forward.1} parent=0 // pred_fallthru
    _
  // Predicated region
  $region6: #{dann_forward.1} parent=0 // pred_check
    _
  $region7: #{dann_forward.1} parent=0 // pred_check_branch
    %23 = sbr.rel (0) target = $region9
  $region8: #{dann_forward.1} parent=0 // pred_region
    _
  $region9: #{dann_forward.1} parent=0 // pred_fallthru
    _
  // Predicated region
  $region10: #{dann_forward.1} parent=0 // pred_check
    _
  $region11: #{dann_forward.1} parent=0 // pred_check_branch
    %25 = sbr.rel (0) target = $region13
  $region12: #{dann_forward.1} parent=0 // pred_region
    _
  $region13: #{dann_forward.1} parent=0 // pred_fallthru
    _
  // Predicated region
  $region14: #{dann_forward.1} parent=0 // pred_check
    _
  $region15: #{dann_forward.1} parent=0 // pred_check_branch
    %27 = sbr.rel (0) target = $region17
  $region16: #{dann_forward.1} parent=0 // pred_region
    _
  $region17: #{dann_forward.1} parent=0 // pred_fallthru
    _
  // Predicated region
  $region18: #{dann_forward.1} parent=0 // pred_check
    _
  $region19: #{dann_forward.1} parent=0 // pred_check_branch
    %29 = sbr.rel (0) target = $region21
  $region20: #{dann_forward.1} parent=0 // pred_region
    _
  $region21: #{dann_forward.1} parent=0 // pred_fallthru
    _
  // Predicated region
  $region22: #{dann_forward.1} parent=0 // pred_check
    _
  $region23: #{dann_forward.1} parent=0 // pred_check_branch
    %31 = sbr.rel (0) target = $region25
  $region24: #{dann_forward.1} parent=0 // pred_region
    _
  $region25: #{dann_forward.1} parent=0 // pred_fallthru
    _
  // Predicated region
  $region26: #{dann_forward.1} parent=0 // pred_check
    _
  $region27: #{dann_forward.1} parent=0 // pred_check_branch
    %33 = sbr.rel (0) target = $region29
  $region28: #{dann_forward.1} parent=0 // pred_region
    _
  $region29: #{dann_forward.1} parent=0 // pred_fallthru
    _
  // Predicated region
  $region30: #{dann_forward.1} parent=0 // pred_check
    _
  $region31: #{dann_forward.1} parent=0 // pred_check_branch
    %35 = sbr.rel (0) target = $region33
  $region32: #{dann_forward.1} parent=0 // pred_region
    _
  $region33: #{dann_forward.1} parent=0 // pred_fallthru
    _
  // Predicated region
  $region34: #{dann_forward.1} parent=0 // pred_check
    _
  $region35: #{dann_forward.1} parent=0 // pred_check_branch
    %37 = sbr.rel (0) target = $region37
  $region36: #{dann_forward.1} parent=0 // pred_region
    _
  $region37: #{dann_forward.1} parent=0 // pred_fallthru
    _
  // Predicated region
  $region38: #{dann_forward.1} parent=0 // pred_check
    _
  $region39: #{dann_forward.1} parent=0 // pred_check_branch
    %39 = sbr.rel (0) target = $region41
  $region40: #{dann_forward.1} parent=0 // pred_region
    _
  $region41: #{dann_forward.1} parent=0 // pred_fallthru
    _
  // Predicated region
  $region42: #{dann_forward.1} parent=0 // pred_check
    _
  $region43: #{dann_forward.1} parent=0 // pred_check_branch
    %41 = sbr.rel (0) target = $region45
  $region44: #{dann_forward.1} parent=0 // pred_region
    _
  $region45: #{dann_forward.1} parent=0 // pred_fallthru
    _
  // Predicated region
  $region46: #{dann_forward.1} parent=0 // pred_check
    _
  $region47: #{dann_forward.1} parent=0 // pred_check_branch
    %43 = sbr.rel (0) target = $region49
  $region48: #{dann_forward.1} parent=0 // pred_region
    _
  $region49: #{dann_forward.1} parent=0 // pred_fallthru
    _
  // Predicated region
  $region50: #{dann_forward.1} parent=0 // pred_check
    _
  $region51: #{dann_forward.1} parent=0 // pred_check_branch
    %45 = sbr.rel (0) target = $region53
  $region52: #{dann_forward.1} parent=0 // pred_region
    _
  $region53: #{dann_forward.1} parent=0 // pred_fallthru
    _
  // Predicated region
  $region54: #{dann_forward.1} parent=0 // pred_check
    _
  $region55: #{dann_forward.1} parent=0 // pred_check_branch
    %47 = sbr.rel (0) target = $region57
  $region56: #{dann_forward.1} parent=0 // pred_region
    _
  $region57: #{dann_forward.1} parent=0 // pred_fallthru
    _
  // Predicated region
  $region58: #{dann_forward.1} parent=0 // pred_check
    _
  $region59: #{dann_forward.1} parent=0 // pred_check_branch
    %49 = sbr.rel (0) target = $region61
  $region60: #{dann_forward.1} parent=0 // pred_region
    _
  $region61: #{dann_forward.1} parent=0 // pred_fallthru
    _
  %v51 = vld [vmem:[%s0] sm:$0xff]
  %v52 = vpack.c.bf16 %v51, %v51
  %v53 = vld [vmem:[%s1] sm:$0xff]
  %v54 = vld [vmem:[%s1 + $0x8] sm:$0xff]
  %v55 = vld [vmem:[%s1 + $0x10] sm:$0xff]
  %v56 = vld [vmem:[%s1 + $0x18] sm:$0xff]
  %v57 = vld [vmem:[%s1 + $0x20] sm:$0xff]
  %v58 = vld [vmem:[%s1 + $0x28] sm:$0xff]
  %v59 = vld [vmem:[%s1 + $0x30] sm:$0xff]
  %v60 = vld [vmem:[%s1 + $0x38] sm:$0xff]
  %v61 = vld [vmem:[%s1 + $0x40] sm:$0xff]
  %v62 = vld [vmem:[%s1 + $0x48] sm:$0xff]
  %v63 = vld [vmem:[%s1 + $0x50] sm:$0xff]
  %v64 = vld [vmem:[%s1 + $0x58] sm:$0xff]
  %v65 = vld [vmem:[%s1 + $0x60] sm:$0xff]
  %v66 = vld [vmem:[%s1 + $0x68] sm:$0xff]
  %v67 = vld [vmem:[%s1 + $0x70] sm:$0xff]
  %v68 = vld [vmem:[%s1 + $0x78] sm:$0xff]
  %v69 = vld [vmem:[%s1 + $0x80] sm:$0xff]
  %v70 = vld [vmem:[%s1 + $0x88] sm:$0xff]
  %v71 = vld [vmem:[%s1 + $0x90] sm:$0xff]
  %v72 = vld [vmem:[%s1 + $0x98] sm:$0xff]
  %v73 = vld [vmem:[%s1 + $0xa0] sm:$0xff]
  %v74 = vld [vmem:[%s1 + $0xa8] sm:$0xff]
  %v75 = vld [vmem:[%s1 + $0xb0] sm:$0xff]
  %v76 = vld [vmem:[%s1 + $0xb8] sm:$0xff]
  %v77 = vld [vmem:[%s1 + $0xc0] sm:$0xff]
  %v78 = vld [vmem:[%s1 + $0xc8] sm:$0xff]
  %v79 = vld [vmem:[%s1 + $0xd0] sm:$0xff]
  %v80 = vld [vmem:[%s1 + $0xd8] sm:$0xff]
  %v81 = vld [vmem:[%s1 + $0xe0] sm:$0xff]
  %v82 = vld [vmem:[%s1 + $0xe8] sm:$0xff]
  %v83 = vld [vmem:[%s1 + $0xf0] sm:$0xff]
  %v84 = vld [vmem:[%s1 + $0xf8] sm:$0xff]
  %v85 = vld [vmem:[%s2] sm:$0xf]
  %v87 = vlaneseq
  %v88 = vshrl.u32 %v87, 7
  %v89 = vsub.s32 0, %v88
  %v90 = vrot.slane %v85, %v89
  %v91 = vlaneseq
  %v92 = vshrl.u32 %v91, 7
  %v93 = vsub.s32 1, %v92
  %v94 = vrot.slane %v85, %v93
  %v95 = vlaneseq
  %v96 = vshrl.u32 %v95, 7
  %v97 = vsub.s32 2, %v96
  %v98 = vrot.slane %v85, %v97
  %v99 = vlaneseq
  %v100 = vshrl.u32 %v99, 7
  %v101 = vsub.s32 3, %v100
  %v102 = vrot.slane %v85, %v101
  %v139 = vunpack.c.l.b16 %v53
  %v140 = vunpack.c.h.b16 %v53
  %v141 = vunpack.c.l.b16 %v54
  %v142 = vunpack.c.h.b16 %v54
  %v143 = vunpack.c.l.b16 %v55
  %v144 = vunpack.c.h.b16 %v55
  %v145 = vunpack.c.l.b16 %v56
  %v146 = vunpack.c.h.b16 %v56
  %v147 = vunpack.c.l.b16 %v57
  %v148 = vunpack.c.h.b16 %v57
  %v149 = vunpack.c.l.b16 %v58
  %v150 = vunpack.c.h.b16 %v58
  %v151 = vunpack.c.l.b16 %v59
  %v152 = vunpack.c.h.b16 %v59
  %v153 = vunpack.c.l.b16 %v60
  %v154 = vunpack.c.h.b16 %v60
  %v155 = vunpack.c.l.b16 %v61
  %v156 = vunpack.c.h.b16 %v61
  %v157 = vunpack.c.l.b16 %v62
  %v158 = vunpack.c.h.b16 %v62
  %v159 = vunpack.c.l.b16 %v63
  %v160 = vunpack.c.h.b16 %v63
  %v161 = vunpack.c.l.b16 %v64
  %v162 = vunpack.c.h.b16 %v64
  %v163 = vunpack.c.l.b16 %v65
  %v164 = vunpack.c.h.b16 %v65
  %v165 = vunpack.c.l.b16 %v66
  %v166 = vunpack.c.h.b16 %v66
  %v167 = vunpack.c.l.b16 %v67
  %v168 = vunpack.c.h.b16 %v67
  %v169 = vunpack.c.l.b16 %v68
  %v170 = vunpack.c.h.b16 %v68
  %v171 = vunpack.c.l.b16 %v69
  %v172 = vunpack.c.h.b16 %v69
  %v173 = vunpack.c.l.b16 %v70
  %v174 = vunpack.c.h.b16 %v70
  %v175 = vunpack.c.l.b16 %v71
  %v176 = vunpack.c.h.b16 %v71
  %v177 = vunpack.c.l.b16 %v72
  %v178 = vunpack.c.h.b16 %v72
  %v179 = vunpack.c.l.b16 %v73
  %v180 = vunpack.c.h.b16 %v73
  %v181 = vunpack.c.l.b16 %v74
  %v182 = vunpack.c.h.b16 %v74
  %v183 = vunpack.c.l.b16 %v75
  %v184 = vunpack.c.h.b16 %v75
  %v185 = vunpack.c.l.b16 %v76
  %v186 = vunpack.c.h.b16 %v76
  %v187 = vunpack.c.l.b16 %v77
  %v188 = vunpack.c.h.b16 %v77
  %v189 = vunpack.c.l.b16 %v78
  %v190 = vunpack.c.h.b16 %v78
  %v191 = vunpack.c.l.b16 %v79
  %v192 = vunpack.c.h.b16 %v79
  %v193 = vunpack.c.l.b16 %v80
  %v194 = vunpack.c.h.b16 %v80
  %v195 = vunpack.c.l.b16 %v81
  %v196 = vunpack.c.h.b16 %v81
  %v197 = vunpack.c.l.b16 %v82
  %v198 = vunpack.c.h.b16 %v82
  %v199 = vunpack.c.l.b16 %v83
  %v200 = vunpack.c.h.b16 %v83
  %v201 = vunpack.c.l.b16 %v84
  %v202 = vunpack.c.h.b16 %v84
  %v203 = vpack.c.b16 %v143, %v139
  %v204 = vpack.c.b16 %v144, %v140
  %v205 = vpack.c.b16 %v145, %v141
  %v206 = vpack.c.b16 %v146, %v142
  %v207 = vpack.c.b16 %v151, %v147
  %v208 = vpack.c.b16 %v152, %v148
  %v209 = vpack.c.b16 %v153, %v149
  %v210 = vpack.c.b16 %v154, %v150
  %v211 = vpack.c.b16 %v159, %v155
  %v212 = vpack.c.b16 %v160, %v156
  %v213 = vpack.c.b16 %v161, %v157
  %v214 = vpack.c.b16 %v162, %v158
  %v215 = vpack.c.b16 %v167, %v163
  %v216 = vpack.c.b16 %v168, %v164
  %v217 = vpack.c.b16 %v169, %v165
  %v218 = vpack.c.b16 %v170, %v166
  %v219 = vpack.c.b16 %v175, %v171
  %v220 = vpack.c.b16 %v176, %v172
  %v221 = vpack.c.b16 %v177, %v173
  %v222 = vpack.c.b16 %v178, %v174
  %v223 = vpack.c.b16 %v183, %v179
  %v224 = vpack.c.b16 %v184, %v180
  %v225 = vpack.c.b16 %v185, %v181
  %v226 = vpack.c.b16 %v186, %v182
  %v227 = vpack.c.b16 %v191, %v187
  %v228 = vpack.c.b16 %v192, %v188
  %v229 = vpack.c.b16 %v193, %v189
  %v230 = vpack.c.b16 %v194, %v190
  %v231 = vpack.c.b16 %v199, %v195
  %v232 = vpack.c.b16 %v200, %v196
  %v233 = vpack.c.b16 %v201, %v197
  %v234 = vpack.c.b16 %v202, %v198
  %267 = vmatprep.subr.bf16.mxu0 %v204
  %268 = vmatpush1.bf16.msra.mxu0 %v203
  %269 = vmatprep.subr.bf16.mxu0 %v208
  %270 = vmatpush1.bf16.msra.mxu0 %v207
  %271 = vmatprep.subr.bf16.mxu0 %v212
  %272 = vmatpush1.bf16.msra.mxu0 %v211
  %273 = vmatprep.subr.bf16.mxu0 %v216
  %274 = vmatpush1.bf16.msra.mxu0 %v215
  %275 = vmatprep.subr.bf16.mxu0 %v220
  %276 = vmatpush1.bf16.msra.mxu0 %v219
  %277 = vmatprep.subr.bf16.mxu0 %v224
  %278 = vmatpush1.bf16.msra.mxu0 %v223
  %279 = vmatprep.subr.bf16.mxu0 %v228
  %280 = vmatpush1.bf16.msra.mxu0 %v227
  %281 = vmatprep.subr.bf16.mxu0 %v232
  %282 = vmatpush1.bf16.msra.mxu0 %v231
  %283 = vmatprep.subr.bf16.mxu0 0
  %284 = vmatpush1.bf16.msra.mxu0 0
  %285 = vmatprep.subr.bf16.mxu0 0
  %286 = vmatpush1.bf16.msra.mxu0 0
  %287 = vmatprep.subr.bf16.mxu0 0
  %288 = vmatpush1.bf16.msra.mxu0 0
  %289 = vmatprep.subr.bf16.mxu0 0
  %290 = vmatpush1.bf16.msra.mxu0 0
  %291 = vmatprep.subr.bf16.mxu0 0
  %292 = vmatpush1.bf16.msra.mxu0 0
  %293 = vmatprep.subr.bf16.mxu0 0
  %294 = vmatpush1.bf16.msra.mxu0 0
  %295 = vmatprep.subr.bf16.mxu0 0
  %296 = vmatpush1.bf16.msra.mxu0 0
  %297 = vmatprep.subr.bf16.mxu0 0
  %298 = vmatpush1.bf16.msra.mxu0 0
  %299 = vmatprep.mubr.bf16.mxu0 0
  %300 = vmatmul.mubr.bf16.gmra.mrb[0].mxu0 %v52
  %v301 = vpop.f32.mrb[0].mxu0
  %v302 = vadd.f32 %v90, %v301
  %v303 = vpop.f32.mrb[0].mxu0
  %v304 = vadd.f32 %v94, %v303
  %v305 = vpop.f32.mrb[0].mxu0
  %v306 = vpop.f32.mrb[0].mxu0
  %307 = vdwg.mxu0
  %308 = vmatprep.subr.bf16.mxu0 %v206
  %309 = vmatpush1.bf16.msra.mxu0 %v205
  %310 = vmatprep.subr.bf16.mxu0 %v210
  %311 = vmatpush1.bf16.msra.mxu0 %v209
  %312 = vmatprep.subr.bf16.mxu0 %v214
  %313 = vmatpush1.bf16.msra.mxu0 %v213
  %314 = vmatprep.subr.bf16.mxu0 %v218
  %315 = vmatpush1.bf16.msra.mxu0 %v217
  %316 = vmatprep.subr.bf16.mxu0 %v222
  %317 = vmatpush1.bf16.msra.mxu0 %v221
  %318 = vmatprep.subr.bf16.mxu0 %v226
  %319 = vmatpush1.bf16.msra.mxu0 %v225
  %320 = vmatprep.subr.bf16.mxu0 %v230
  %321 = vmatpush1.bf16.msra.mxu0 %v229
  %322 = vmatprep.subr.bf16.mxu0 %v234
  %323 = vmatpush1.bf16.msra.mxu0 %v233
  %324 = vmatprep.subr.bf16.mxu0 0
  %325 = vmatpush1.bf16.msra.mxu0 0
  %326 = vmatprep.subr.bf16.mxu0 0
  %327 = vmatpush1.bf16.msra.mxu0 0
  %328 = vmatprep.subr.bf16.mxu0 0
  %329 = vmatpush1.bf16.msra.mxu0 0
  %330 = vmatprep.subr.bf16.mxu0 0
  %331 = vmatpush1.bf16.msra.mxu0 0
  %332 = vmatprep.subr.bf16.mxu0 0
  %333 = vmatpush1.bf16.msra.mxu0 0
  %334 = vmatprep.subr.bf16.mxu0 0
  %335 = vmatpush1.bf16.msra.mxu0 0
  %336 = vmatprep.subr.bf16.mxu0 0
  %337 = vmatpush1.bf16.msra.mxu0 0
  %338 = vmatprep.subr.bf16.mxu0 0
  %339 = vmatpush1.bf16.msra.mxu0 0
  %340 = vmatprep.mubr.bf16.mxu0 0
  %341 = vmatmul.mubr.bf16.gmra.mrb[0].mxu0 %v52
  %v342 = vpop.f32.mrb[0].mxu0
  %v343 = vadd.f32 %v98, %v342
  %v344 = vpop.f32.mrb[0].mxu0
  %v345 = vadd.f32 %v102, %v344
  %v346 = vpop.f32.mrb[0].mxu0
  %v347 = vpop.f32.mrb[0].mxu0
  %348 = vdwg.mxu0
  %v349 = vmax.f32 %v302, 0.0
  %v350 = vmax.f32 %v304, 0.0
  %v351 = vmax.f32 %v343, 0.0
  %v352 = vmax.f32 %v345, 0.0
  %v353 = vpack.c.bf16 %v349, %v349
  %v354 = vpack.c.bf16 %v350, %v350
  %v355 = vpack.c.bf16 %v351, %v351
  %v356 = vpack.c.bf16 %v352, %v352
  %v357 = vld [vmem:[%s3] sm:$0xff]
  %v358 = vld [vmem:[%s3 + $0x8] sm:$0xff]
  %v359 = vld [vmem:[%s3 + $0x10] sm:$0xff]
  %v360 = vld [vmem:[%s3 + $0x18] sm:$0xff]
  %v361 = vld [vmem:[%s3 + $0x20] sm:$0xff]
  %v362 = vld [vmem:[%s3 + $0x28] sm:$0xff]
  %v363 = vld [vmem:[%s3 + $0x30] sm:$0xff]
  %v364 = vld [vmem:[%s3 + $0x38] sm:$0xff]
  %v365 = vld [vmem:[%s3 + $0x40] sm:$0xff]
  %v366 = vld [vmem:[%s3 + $0x48] sm:$0xff]
  %v367 = vld [vmem:[%s3 + $0x50] sm:$0xff]
  %v368 = vld [vmem:[%s3 + $0x58] sm:$0xff]
  %v369 = vld [vmem:[%s3 + $0x60] sm:$0xff]
  %v370 = vld [vmem:[%s3 + $0x68] sm:$0xff]
  %v371 = vld [vmem:[%s3 + $0x70] sm:$0xff]
  %v372 = vld [vmem:[%s3 + $0x78] sm:$0xff]
  %v373 = vld [vmem:[%s3 + $0x80] sm:$0xff]
  %v374 = vld [vmem:[%s3 + $0x88] sm:$0xff]
  %v375 = vld [vmem:[%s3 + $0x90] sm:$0xff]
  %v376 = vld [vmem:[%s3 + $0x98] sm:$0xff]
  %v377 = vld [vmem:[%s3 + $0xa0] sm:$0xff]
  %v378 = vld [vmem:[%s3 + $0xa8] sm:$0xff]
  %v379 = vld [vmem:[%s3 + $0xb0] sm:$0xff]
  %v380 = vld [vmem:[%s3 + $0xb8] sm:$0xff]
  %v381 = vld [vmem:[%s3 + $0xc0] sm:$0xff]
  %v382 = vld [vmem:[%s3 + $0xc8] sm:$0xff]
  %v383 = vld [vmem:[%s3 + $0xd0] sm:$0xff]
  %v384 = vld [vmem:[%s3 + $0xd8] sm:$0xff]
  %v385 = vld [vmem:[%s3 + $0xe0] sm:$0xff]
  %v386 = vld [vmem:[%s3 + $0xe8] sm:$0xff]
  %v387 = vld [vmem:[%s3 + $0xf0] sm:$0xff]
  %v388 = vld [vmem:[%s3 + $0xf8] sm:$0xff]
  %v389 = vld [vmem:[%s3 + $0x100] sm:$0xff]
  %v390 = vld [vmem:[%s3 + $0x108] sm:$0xff]
  %v391 = vld [vmem:[%s3 + $0x110] sm:$0xff]
  %v392 = vld [vmem:[%s3 + $0x118] sm:$0xff]
  %v393 = vld [vmem:[%s3 + $0x120] sm:$0xff]
  %v394 = vld [vmem:[%s3 + $0x128] sm:$0xff]
  %v395 = vld [vmem:[%s3 + $0x130] sm:$0xff]
  %v396 = vld [vmem:[%s3 + $0x138] sm:$0xff]
  %v397 = vld [vmem:[%s3 + $0x140] sm:$0xff]
  %v398 = vld [vmem:[%s3 + $0x148] sm:$0xff]
  %v399 = vld [vmem:[%s3 + $0x150] sm:$0xff]
  %v400 = vld [vmem:[%s3 + $0x158] sm:$0xff]
  %v401 = vld [vmem:[%s3 + $0x160] sm:$0xff]
  %v402 = vld [vmem:[%s3 + $0x168] sm:$0xff]
  %v403 = vld [vmem:[%s3 + $0x170] sm:$0xff]
  %v404 = vld [vmem:[%s3 + $0x178] sm:$0xff]
  %v405 = vld [vmem:[%s3 + $0x180] sm:$0xff]
  %v406 = vld [vmem:[%s3 + $0x188] sm:$0xff]
  %v407 = vld [vmem:[%s3 + $0x190] sm:$0xff]
  %v408 = vld [vmem:[%s3 + $0x198] sm:$0xff]
  %v409 = vld [vmem:[%s3 + $0x1a0] sm:$0xff]
  %v410 = vld [vmem:[%s3 + $0x1a8] sm:$0xff]
  %v411 = vld [vmem:[%s3 + $0x1b0] sm:$0xff]
  %v412 = vld [vmem:[%s3 + $0x1b8] sm:$0xff]
  %v413 = vld [vmem:[%s3 + $0x1c0] sm:$0xff]
  %v414 = vld [vmem:[%s3 + $0x1c8] sm:$0xff]
  %v415 = vld [vmem:[%s3 + $0x1d0] sm:$0xff]
  %v416 = vld [vmem:[%s3 + $0x1d8] sm:$0xff]
  %v417 = vld [vmem:[%s3 + $0x1e0] sm:$0xff]
  %v418 = vld [vmem:[%s3 + $0x1e8] sm:$0xff]
  %v419 = vld [vmem:[%s3 + $0x1f0] sm:$0xff]
  %v420 = vld [vmem:[%s3 + $0x1f8] sm:$0xff]
  %v421 = vld [vmem:[%s4] sm:$0x3]
  %v423 = vlaneseq
  %v424 = vshrl.u32 %v423, 7
  %v425 = vsub.s32 0, %v424
  %v426 = vrot.slane %v421, %v425
  %v427 = vlaneseq
  %v428 = vshrl.u32 %v427, 7
  %v429 = vsub.s32 1, %v428
  %v430 = vrot.slane %v421, %v429
  %v497 = vunpack.c.l.b16 %v357
  %v498 = vunpack.c.h.b16 %v357
  %v499 = vunpack.c.l.b16 %v358
  %v500 = vunpack.c.h.b16 %v358
  %v501 = vunpack.c.l.b16 %v359
  %v502 = vunpack.c.h.b16 %v359
  %v503 = vunpack.c.l.b16 %v360
  %v504 = vunpack.c.h.b16 %v360
  %v505 = vunpack.c.l.b16 %v361
  %v506 = vunpack.c.h.b16 %v361
  %v507 = vunpack.c.l.b16 %v362
  %v508 = vunpack.c.h.b16 %v362
  %v509 = vunpack.c.l.b16 %v363
  %v510 = vunpack.c.h.b16 %v363
  %v511 = vunpack.c.l.b16 %v364
  %v512 = vunpack.c.h.b16 %v364
  %v513 = vunpack.c.l.b16 %v365
  %v514 = vunpack.c.h.b16 %v365
  %v515 = vunpack.c.l.b16 %v366
  %v516 = vunpack.c.h.b16 %v366
  %v517 = vunpack.c.l.b16 %v367
  %v518 = vunpack.c.h.b16 %v367
  %v519 = vunpack.c.l.b16 %v368
  %v520 = vunpack.c.h.b16 %v368
  %v521 = vunpack.c.l.b16 %v369
  %v522 = vunpack.c.h.b16 %v369
  %v523 = vunpack.c.l.b16 %v370
  %v524 = vunpack.c.h.b16 %v370
  %v525 = vunpack.c.l.b16 %v371
  %v526 = vunpack.c.h.b16 %v371
  %v527 = vunpack.c.l.b16 %v372
  %v528 = vunpack.c.h.b16 %v372
  %v529 = vunpack.c.l.b16 %v373
  %v530 = vunpack.c.h.b16 %v373
  %v531 = vunpack.c.l.b16 %v374
  %v532 = vunpack.c.h.b16 %v374
  %v533 = vunpack.c.l.b16 %v375
  %v534 = vunpack.c.h.b16 %v375
  %v535 = vunpack.c.l.b16 %v376
  %v536 = vunpack.c.h.b16 %v376
  %v537 = vunpack.c.l.b16 %v377
  %v538 = vunpack.c.h.b16 %v377
  %v539 = vunpack.c.l.b16 %v378
  %v540 = vunpack.c.h.b16 %v378
  %v541 = vunpack.c.l.b16 %v379
  %v542 = vunpack.c.h.b16 %v379
  %v543 = vunpack.c.l.b16 %v380
  %v544 = vunpack.c.h.b16 %v380
  %v545 = vunpack.c.l.b16 %v381
  %v546 = vunpack.c.h.b16 %v381
  %v547 = vunpack.c.l.b16 %v382
  %v548 = vunpack.c.h.b16 %v382
  %v549 = vunpack.c.l.b16 %v383
  %v550 = vunpack.c.h.b16 %v383
  %v551 = vunpack.c.l.b16 %v384
  %v552 = vunpack.c.h.b16 %v384
  %v553 = vunpack.c.l.b16 %v385
  %v554 = vunpack.c.h.b16 %v385
  %v555 = vunpack.c.l.b16 %v386
  %v556 = vunpack.c.h.b16 %v386
  %v557 = vunpack.c.l.b16 %v387
  %v558 = vunpack.c.h.b16 %v387
  %v559 = vunpack.c.l.b16 %v388
  %v560 = vunpack.c.h.b16 %v388
  %v561 = vunpack.c.l.b16 %v389
  %v562 = vunpack.c.h.b16 %v389
  %v563 = vunpack.c.l.b16 %v390
  %v564 = vunpack.c.h.b16 %v390
  %v565 = vunpack.c.l.b16 %v391
  %v566 = vunpack.c.h.b16 %v391
  %v567 = vunpack.c.l.b16 %v392
  %v568 = vunpack.c.h.b16 %v392
  %v569 = vunpack.c.l.b16 %v393
  %v570 = vunpack.c.h.b16 %v393
  %v571 = vunpack.c.l.b16 %v394
  %v572 = vunpack.c.h.b16 %v394
  %v573 = vunpack.c.l.b16 %v395
  %v574 = vunpack.c.h.b16 %v395
  %v575 = vunpack.c.l.b16 %v396
  %v576 = vunpack.c.h.b16 %v396
  %v577 = vunpack.c.l.b16 %v397
  %v578 = vunpack.c.h.b16 %v397
  %v579 = vunpack.c.l.b16 %v398
  %v580 = vunpack.c.h.b16 %v398
  %v581 = vunpack.c.l.b16 %v399
  %v582 = vunpack.c.h.b16 %v399
  %v583 = vunpack.c.l.b16 %v400
  %v584 = vunpack.c.h.b16 %v400
  %v585 = vunpack.c.l.b16 %v401
  %v586 = vunpack.c.h.b16 %v401
  %v587 = vunpack.c.l.b16 %v402
  %v588 = vunpack.c.h.b16 %v402
  %v589 = vunpack.c.l.b16 %v403
  %v590 = vunpack.c.h.b16 %v403
  %v591 = vunpack.c.l.b16 %v404
  %v592 = vunpack.c.h.b16 %v404
  %v593 = vunpack.c.l.b16 %v405
  %v594 = vunpack.c.h.b16 %v405
  %v595 = vunpack.c.l.b16 %v406
  %v596 = vunpack.c.h.b16 %v406
  %v597 = vunpack.c.l.b16 %v407
  %v598 = vunpack.c.h.b16 %v407
  %v599 = vunpack.c.l.b16 %v408
  %v600 = vunpack.c.h.b16 %v408
  %v601 = vunpack.c.l.b16 %v409
  %v602 = vunpack.c.h.b16 %v409
  %v603 = vunpack.c.l.b16 %v410
  %v604 = vunpack.c.h.b16 %v410
  %v605 = vunpack.c.l.b16 %v411
  %v606 = vunpack.c.h.b16 %v411
  %v607 = vunpack.c.l.b16 %v412
  %v608 = vunpack.c.h.b16 %v412
  %v609 = vunpack.c.l.b16 %v413
  %v610 = vunpack.c.h.b16 %v413
  %v611 = vunpack.c.l.b16 %v414
  %v612 = vunpack.c.h.b16 %v414
  %v613 = vunpack.c.l.b16 %v415
  %v614 = vunpack.c.h.b16 %v415
  %v615 = vunpack.c.l.b16 %v416
  %v616 = vunpack.c.h.b16 %v416
  %v617 = vunpack.c.l.b16 %v417
  %v618 = vunpack.c.h.b16 %v417
  %v619 = vunpack.c.l.b16 %v418
  %v620 = vunpack.c.h.b16 %v418
  %v621 = vunpack.c.l.b16 %v419
  %v622 = vunpack.c.h.b16 %v419
  %v623 = vunpack.c.l.b16 %v420
  %v624 = vunpack.c.h.b16 %v420
  %v625 = vpack.c.b16 %v499, %v497
  %v626 = vpack.c.b16 %v500, %v498
  %v627 = vpack.c.b16 %v503, %v501
  %v628 = vpack.c.b16 %v504, %v502
  %v629 = vpack.c.b16 %v507, %v505
  %v630 = vpack.c.b16 %v508, %v506
  %v631 = vpack.c.b16 %v511, %v509
  %v632 = vpack.c.b16 %v512, %v510
  %v633 = vpack.c.b16 %v515, %v513
  %v634 = vpack.c.b16 %v516, %v514
  %v635 = vpack.c.b16 %v519, %v517
  %v636 = vpack.c.b16 %v520, %v518
  %v637 = vpack.c.b16 %v523, %v521
  %v638 = vpack.c.b16 %v524, %v522
  %v639 = vpack.c.b16 %v527, %v525
  %v640 = vpack.c.b16 %v528, %v526
  %v641 = vpack.c.b16 %v531, %v529
  %v642 = vpack.c.b16 %v532, %v530
  %v643 = vpack.c.b16 %v535, %v533
  %v644 = vpack.c.b16 %v536, %v534
  %v645 = vpack.c.b16 %v539, %v537
  %v646 = vpack.c.b16 %v540, %v538
  %v647 = vpack.c.b16 %v543, %v541
  %v648 = vpack.c.b16 %v544, %v542
  %v649 = vpack.c.b16 %v547, %v545
  %v650 = vpack.c.b16 %v548, %v546
  %v651 = vpack.c.b16 %v551, %v549
  %v652 = vpack.c.b16 %v552, %v550
  %v653 = vpack.c.b16 %v555, %v553
  %v654 = vpack.c.b16 %v556, %v554
  %v655 = vpack.c.b16 %v559, %v557
  %v656 = vpack.c.b16 %v560, %v558
  %v657 = vpack.c.b16 %v563, %v561
  %v658 = vpack.c.b16 %v564, %v562
  %v659 = vpack.c.b16 %v567, %v565
  %v660 = vpack.c.b16 %v568, %v566
  %v661 = vpack.c.b16 %v571, %v569
  %v662 = vpack.c.b16 %v572, %v570
  %v663 = vpack.c.b16 %v575, %v573
  %v664 = vpack.c.b16 %v576, %v574
  %v665 = vpack.c.b16 %v579, %v577
  %v666 = vpack.c.b16 %v580, %v578
  %v667 = vpack.c.b16 %v583, %v581
  %v668 = vpack.c.b16 %v584, %v582
  %v669 = vpack.c.b16 %v587, %v585
  %v670 = vpack.c.b16 %v588, %v586
  %v671 = vpack.c.b16 %v591, %v589
  %v672 = vpack.c.b16 %v592, %v590
  %v673 = vpack.c.b16 %v595, %v593
  %v674 = vpack.c.b16 %v596, %v594
  %v675 = vpack.c.b16 %v599, %v597
  %v676 = vpack.c.b16 %v600, %v598
  %v677 = vpack.c.b16 %v603, %v601
  %v678 = vpack.c.b16 %v604, %v602
  %v679 = vpack.c.b16 %v607, %v605
  %v680 = vpack.c.b16 %v608, %v606
  %v681 = vpack.c.b16 %v611, %v609
  %v682 = vpack.c.b16 %v612, %v610
  %v683 = vpack.c.b16 %v615, %v613
  %v684 = vpack.c.b16 %v616, %v614
  %v685 = vpack.c.b16 %v619, %v617
  %v686 = vpack.c.b16 %v620, %v618
  %v687 = vpack.c.b16 %v623, %v621
  %v688 = vpack.c.b16 %v624, %v622
  %753 = vmatprep.subr.bf16.mxu0 %v626
  %754 = vmatpush1.bf16.msra.mxu0 %v625
  %755 = vmatprep.subr.bf16.mxu0 %v628
  %756 = vmatpush1.bf16.msra.mxu0 %v627
  %757 = vmatprep.subr.bf16.mxu0 %v630
  %758 = vmatpush1.bf16.msra.mxu0 %v629
  %759 = vmatprep.subr.bf16.mxu0 %v632
  %760 = vmatpush1.bf16.msra.mxu0 %v631
  %761 = vmatprep.subr.bf16.mxu0 %v634
  %762 = vmatpush1.bf16.msra.mxu0 %v633
  %763 = vmatprep.subr.bf16.mxu0 %v636
  %764 = vmatpush1.bf16.msra.mxu0 %v635
  %765 = vmatprep.subr.bf16.mxu0 %v638
  %766 = vmatpush1.bf16.msra.mxu0 %v637
  %767 = vmatprep.subr.bf16.mxu0 %v640
  %768 = vmatpush1.bf16.msra.mxu0 %v639
  %769 = vmatprep.subr.bf16.mxu0 %v642
  %770 = vmatpush1.bf16.msra.mxu0 %v641
  %771 = vmatprep.subr.bf16.mxu0 %v644
  %772 = vmatpush1.bf16.msra.mxu0 %v643
  %773 = vmatprep.subr.bf16.mxu0 %v646
  %774 = vmatpush1.bf16.msra.mxu0 %v645
  %775 = vmatprep.subr.bf16.mxu0 %v648
  %776 = vmatpush1.bf16.msra.mxu0 %v647
  %777 = vmatprep.subr.bf16.mxu0 %v650
  %778 = vmatpush1.bf16.msra.mxu0 %v649
  %779 = vmatprep.subr.bf16.mxu0 %v652
  %780 = vmatpush1.bf16.msra.mxu0 %v651
  %781 = vmatprep.subr.bf16.mxu0 %v654
  %782 = vmatpush1.bf16.msra.mxu0 %v653
  %783 = vmatprep.subr.bf16.mxu0 %v656
  %784 = vmatpush1.bf16.msra.mxu0 %v655
  %785 = vmatprep.mubr.bf16.mxu0 %v354
  %786 = vmatmul.mubr.bf16.gmra.mrb[0].mxu0 %v353
  %v787 = vpop.f32.mrb[0].mxu0
  %v788 = vadd.f32 %v426, %v787
  %v789 = vpop.f32.mrb[0].mxu0
  %v790 = vadd.f32 %v430, %v789
  %v791 = vpop.f32.mrb[0].mxu0
  %v792 = vpop.f32.mrb[0].mxu0
  %793 = vdwg.mxu0
  %794 = vmatprep.subr.bf16.mxu0 %v658
  %795 = vmatpush1.bf16.msra.mxu0 %v657
  %796 = vmatprep.subr.bf16.mxu0 %v660
  %797 = vmatpush1.bf16.msra.mxu0 %v659
  %798 = vmatprep.subr.bf16.mxu0 %v662
  %799 = vmatpush1.bf16.msra.mxu0 %v661
  %800 = vmatprep.subr.bf16.mxu0 %v664
  %801 = vmatpush1.bf16.msra.mxu0 %v663
  %802 = vmatprep.subr.bf16.mxu0 %v666
  %803 = vmatpush1.bf16.msra.mxu0 %v665
  %804 = vmatprep.subr.bf16.mxu0 %v668
  %805 = vmatpush1.bf16.msra.mxu0 %v667
  %806 = vmatprep.subr.bf16.mxu0 %v670
  %807 = vmatpush1.bf16.msra.mxu0 %v669
  %808 = vmatprep.subr.bf16.mxu0 %v672
  %809 = vmatpush1.bf16.msra.mxu0 %v671
  %810 = vmatprep.subr.bf16.mxu0 %v674
  %811 = vmatpush1.bf16.msra.mxu0 %v673
  %812 = vmatprep.subr.bf16.mxu0 %v676
  %813 = vmatpush1.bf16.msra.mxu0 %v675
  %814 = vmatprep.subr.bf16.mxu0 %v678
  %815 = vmatpush1.bf16.msra.mxu0 %v677
  %816 = vmatprep.subr.bf16.mxu0 %v680
  %817 = vmatpush1.bf16.msra.mxu0 %v679
  %818 = vmatprep.subr.bf16.mxu0 %v682
  %819 = vmatpush1.bf16.msra.mxu0 %v681
  %820 = vmatprep.subr.bf16.mxu0 %v684
  %821 = vmatpush1.bf16.msra.mxu0 %v683
  %822 = vmatprep.subr.bf16.mxu0 %v686
  %823 = vmatpush1.bf16.msra.mxu0 %v685
  %824 = vmatprep.subr.bf16.mxu0 %v688
  %825 = vmatpush1.bf16.msra.mxu0 %v687
  %826 = vmatprep.mubr.bf16.mxu0 %v356
  %827 = vmatmul.mubr.bf16.gmra.mrb[0].mxu0 %v355
  %v828 = vpop.f32.mrb[0].mxu0
  %v829 = vadd.f32 %v788, %v828
  %v830 = vpop.f32.mrb[0].mxu0
  %v831 = vadd.f32 %v790, %v830
  %v832 = vpop.f32.mrb[0].mxu0
  %v833 = vpop.f32.mrb[0].mxu0
  %834 = vdwg.mxu0
  %v835 = vmax.f32 %v829, 0.0
  %v836 = vmax.f32 %v831, 0.0
  %v837 = vpack.c.bf16 %v835, %v835
  %v838 = vpack.c.bf16 %v836, %v836
  %v839 = vld [vmem:[%s5] sm:$0xf]
  %v840 = vld [vmem:[%s5 + $0x4] sm:$0xf]
  %v841 = vld [vmem:[%s5 + $0x8] sm:$0xf]
  %v842 = vld [vmem:[%s5 + $0xc] sm:$0xf]
  %v843 = vld [vmem:[%s5 + $0x10] sm:$0xf]
  %v844 = vld [vmem:[%s5 + $0x14] sm:$0xf]
  %v845 = vld [vmem:[%s5 + $0x18] sm:$0xf]
  %v846 = vld [vmem:[%s5 + $0x1c] sm:$0xf]
  %v847 = vld [vmem:[%s5 + $0x20] sm:$0xf]
  %v848 = vld [vmem:[%s5 + $0x24] sm:$0xf]
  %v849 = vld [vmem:[%s5 + $0x28] sm:$0xf]
  %v850 = vld [vmem:[%s5 + $0x2c] sm:$0xf]
  %v851 = vld [vmem:[%s5 + $0x30] sm:$0xf]
  %v852 = vld [vmem:[%s5 + $0x34] sm:$0xf]
  %v853 = vld [vmem:[%s5 + $0x38] sm:$0xf]
  %v854 = vld [vmem:[%s5 + $0x3c] sm:$0xf]
  %v855 = vld [vmem:[%s5 + $0x40] sm:$0xf]
  %v856 = vld [vmem:[%s5 + $0x44] sm:$0xf]
  %v857 = vld [vmem:[%s5 + $0x48] sm:$0xf]
  %v858 = vld [vmem:[%s5 + $0x4c] sm:$0xf]
  %v859 = vld [vmem:[%s5 + $0x50] sm:$0xf]
  %v860 = vld [vmem:[%s5 + $0x54] sm:$0xf]
  %v861 = vld [vmem:[%s5 + $0x58] sm:$0xf]
  %v862 = vld [vmem:[%s5 + $0x5c] sm:$0xf]
  %v863 = vld [vmem:[%s5 + $0x60] sm:$0xf]
  %v864 = vld [vmem:[%s5 + $0x64] sm:$0xf]
  %v865 = vld [vmem:[%s5 + $0x68] sm:$0xf]
  %v866 = vld [vmem:[%s5 + $0x6c] sm:$0xf]
  %v867 = vld [vmem:[%s5 + $0x70] sm:$0xf]
  %v868 = vld [vmem:[%s5 + $0x74] sm:$0xf]
  %v869 = vld [vmem:[%s5 + $0x78] sm:$0xf]
  %v870 = vld [vmem:[%s5 + $0x7c] sm:$0xf]
  %v871 = vld [vmem:[%s6] sm:$0x1]
  %v873 = vlaneseq
  %v874 = vshrl.u32 %v873, 7
  %v875 = vsub.s32 0, %v874
  %v876 = vrot.slane %v871, %v875
  %v910 = vunpack.c.l.b16 %v839
  %v911 = vunpack.c.l.b16 %v840
  %v912 = vunpack.c.l.b16 %v841
  %v913 = vunpack.c.l.b16 %v842
  %v914 = vunpack.c.l.b16 %v843
  %v915 = vunpack.c.l.b16 %v844
  %v916 = vunpack.c.l.b16 %v845
  %v917 = vunpack.c.l.b16 %v846
  %v918 = vunpack.c.l.b16 %v847
  %v919 = vunpack.c.l.b16 %v848
  %v920 = vunpack.c.l.b16 %v849
  %v921 = vunpack.c.l.b16 %v850
  %v922 = vunpack.c.l.b16 %v851
  %v923 = vunpack.c.l.b16 %v852
  %v924 = vunpack.c.l.b16 %v853
  %v925 = vunpack.c.l.b16 %v854
  %v926 = vunpack.c.l.b16 %v855
  %v927 = vunpack.c.l.b16 %v856
  %v928 = vunpack.c.l.b16 %v857
  %v929 = vunpack.c.l.b16 %v858
  %v930 = vunpack.c.l.b16 %v859
  %v931 = vunpack.c.l.b16 %v860
  %v932 = vunpack.c.l.b16 %v861
  %v933 = vunpack.c.l.b16 %v862
  %v934 = vunpack.c.l.b16 %v863
  %v935 = vunpack.c.l.b16 %v864
  %v936 = vunpack.c.l.b16 %v865
  %v937 = vunpack.c.l.b16 %v866
  %v938 = vunpack.c.l.b16 %v867
  %v939 = vunpack.c.l.b16 %v868
  %v940 = vunpack.c.l.b16 %v869
  %v941 = vunpack.c.l.b16 %v870
  %v942 = vpack.c.b16 %v911, %v910
  %v943 = vpack.c.b16 %v913, %v912
  %v944 = vpack.c.b16 %v915, %v914
  %v945 = vpack.c.b16 %v917, %v916
  %v946 = vpack.c.b16 %v919, %v918
  %v947 = vpack.c.b16 %v921, %v920
  %v948 = vpack.c.b16 %v923, %v922
  %v949 = vpack.c.b16 %v925, %v924
  %v950 = vpack.c.b16 %v927, %v926
  %v951 = vpack.c.b16 %v929, %v928
  %v952 = vpack.c.b16 %v931, %v930
  %v953 = vpack.c.b16 %v933, %v932
  %v954 = vpack.c.b16 %v935, %v934
  %v955 = vpack.c.b16 %v937, %v936
  %v956 = vpack.c.b16 %v939, %v938
  %v957 = vpack.c.b16 %v941, %v940
  %974 = vmatprep.subr.bf16.mxu0 0
  %975 = vmatpush1.bf16.msra.mxu0 %v942
  %976 = vmatprep.subr.bf16.mxu0 0
  %977 = vmatpush1.bf16.msra.mxu0 %v943
  %978 = vmatprep.subr.bf16.mxu0 0
  %979 = vmatpush1.bf16.msra.mxu0 %v944
  %980 = vmatprep.subr.bf16.mxu0 0
  %981 = vmatpush1.bf16.msra.mxu0 %v945
  %982 = vmatprep.subr.bf16.mxu0 0
  %983 = vmatpush1.bf16.msra.mxu0 %v946
  %984 = vmatprep.subr.bf16.mxu0 0
  %985 = vmatpush1.bf16.msra.mxu0 %v947
  %986 = vmatprep.subr.bf16.mxu0 0
  %987 = vmatpush1.bf16.msra.mxu0 %v948
  %988 = vmatprep.subr.bf16.mxu0 0
  %989 = vmatpush1.bf16.msra.mxu0 %v949
  %990 = vmatprep.subr.bf16.mxu0 0
  %991 = vmatpush1.bf16.msra.mxu0 %v950
  %992 = vmatprep.subr.bf16.mxu0 0
  %993 = vmatpush1.bf16.msra.mxu0 %v951
  %994 = vmatprep.subr.bf16.mxu0 0
  %995 = vmatpush1.bf16.msra.mxu0 %v952
  %996 = vmatprep.subr.bf16.mxu0 0
  %997 = vmatpush1.bf16.msra.mxu0 %v953
  %998 = vmatprep.subr.bf16.mxu0 0
  %999 = vmatpush1.bf16.msra.mxu0 %v954
  %1000 = vmatprep.subr.bf16.mxu0 0
  %1001 = vmatpush1.bf16.msra.mxu0 %v955
  %1002 = vmatprep.subr.bf16.mxu0 0
  %1003 = vmatpush1.bf16.msra.mxu0 %v956
  %1004 = vmatprep.subr.bf16.mxu0 0
  %1005 = vmatpush1.bf16.msra.mxu0 %v957
  %1006 = vmatprep.mubr.bf16.mxu0 %v838
  %1007 = vmatmul.mubr.bf16.gmra.mrb[0].mxu0 %v837
  %v1008 = vpop.f32.mrb[0].mxu0
  %v1009 = vadd.f32 %v876, %v1008
  %v1010 = vpop.f32.mrb[0].mxu0
  %v1011 = vpop.f32.mrb[0].mxu0
  %v1012 = vpop.f32.mrb[0].mxu0
  %1013 = vdwg.mxu0
  %v1014 = vmax.f32 %v1009, 0.0
  %v1015 = vpack.c.bf16 %v1014, %v1014
  %v1016 = vld [vmem:[%s7] sm:$0xff]
  %v1017 = vld [vmem:[%s7 + $0x8] sm:$0xff]
  %v1018 = vld [vmem:[%s7 + $0x10] sm:$0xff]
  %v1019 = vld [vmem:[%s7 + $0x18] sm:$0xff]
  %v1020 = vld [vmem:[%s7 + $0x20] sm:$0xff]
  %v1021 = vld [vmem:[%s7 + $0x28] sm:$0xff]
  %v1022 = vld [vmem:[%s7 + $0x30] sm:$0xff]
  %v1023 = vld [vmem:[%s7 + $0x38] sm:$0xff]
  %v1024 = vld [vmem:[%s8] sm:$0xf]
  %v1026 = vlaneseq
  %v1027 = vshrl.u32 %v1026, 7
  %v1028 = vsub.s32 0, %v1027
  %v1029 = vrot.slane %v1024, %v1028
  %v1030 = vlaneseq
  %v1031 = vshrl.u32 %v1030, 7
  %v1032 = vsub.s32 1, %v1031
  %v1033 = vrot.slane %v1024, %v1032
  %v1034 = vlaneseq
  %v1035 = vshrl.u32 %v1034, 7
  %v1036 = vsub.s32 2, %v1035
  %v1037 = vrot.slane %v1024, %v1036
  %v1038 = vlaneseq
  %v1039 = vshrl.u32 %v1038, 7
  %v1040 = vsub.s32 3, %v1039
  %v1041 = vrot.slane %v1024, %v1040
  %v1054 = vunpack.c.l.b16 %v1016
  %v1055 = vunpack.c.h.b16 %v1016
  %v1056 = vunpack.c.l.b16 %v1017
  %v1057 = vunpack.c.h.b16 %v1017
  %v1058 = vunpack.c.l.b16 %v1018
  %v1059 = vunpack.c.h.b16 %v1018
  %v1060 = vunpack.c.l.b16 %v1019
  %v1061 = vunpack.c.h.b16 %v1019
  %v1062 = vunpack.c.l.b16 %v1020
  %v1063 = vunpack.c.h.b16 %v1020
  %v1064 = vunpack.c.l.b16 %v1021
  %v1065 = vunpack.c.h.b16 %v1021
  %v1066 = vunpack.c.l.b16 %v1022
  %v1067 = vunpack.c.h.b16 %v1022
  %v1068 = vunpack.c.l.b16 %v1023
  %v1069 = vunpack.c.h.b16 %v1023
  %v1070 = vpack.c.b16 %v1058, %v1054
  %v1071 = vpack.c.b16 %v1059, %v1055
  %v1072 = vpack.c.b16 %v1060, %v1056
  %v1073 = vpack.c.b16 %v1061, %v1057
  %v1074 = vpack.c.b16 %v1066, %v1062
  %v1075 = vpack.c.b16 %v1067, %v1063
  %v1076 = vpack.c.b16 %v1068, %v1064
  %v1077 = vpack.c.b16 %v1069, %v1065
  %vm1086 = vcmask 261120
  %v1088 = vsel %vm1086, %v1015, 0
  %1090 = vmatprep.subr.bf16.mxu0 %v1071
  %1091 = vmatpush1.bf16.msra.mxu0 %v1070
  %1092 = vmatprep.subr.bf16.mxu0 %v1075
  %1093 = vmatpush1.bf16.msra.mxu0 %v1074
  %1094 = vmatprep.subr.bf16.mxu0 0
  %1095 = vmatpush1.bf16.msra.mxu0 0
  %1096 = vmatprep.subr.bf16.mxu0 0
  %1097 = vmatpush1.bf16.msra.mxu0 0
  %1098 = vmatprep.subr.bf16.mxu0 0
  %1099 = vmatpush1.bf16.msra.mxu0 0
  %1100 = vmatprep.subr.bf16.mxu0 0
  %1101 = vmatpush1.bf16.msra.mxu0 0
  %1102 = vmatprep.subr.bf16.mxu0 0
  %1103 = vmatpush1.bf16.msra.mxu0 0
  %1104 = vmatprep.subr.bf16.mxu0 0
  %1105 = vmatpush1.bf16.msra.mxu0 0
  %1106 = vmatprep.subr.bf16.mxu0 0
  %1107 = vmatpush1.bf16.msra.mxu0 0
  %1108 = vmatprep.subr.bf16.mxu0 0
  %1109 = vmatpush1.bf16.msra.mxu0 0
  %1110 = vmatprep.subr.bf16.mxu0 0
  %1111 = vmatpush1.bf16.msra.mxu0 0
  %1112 = vmatprep.subr.bf16.mxu0 0
  %1113 = vmatpush1.bf16.msra.mxu0 0
  %1114 = vmatprep.subr.bf16.mxu0 0
  %1115 = vmatpush1.bf16.msra.mxu0 0
  %1116 = vmatprep.subr.bf16.mxu0 0
  %1117 = vmatpush1.bf16.msra.mxu0 0
  %1118 = vmatprep.subr.bf16.mxu0 0
  %1119 = vmatpush1.bf16.msra.mxu0 0
  %1120 = vmatprep.subr.bf16.mxu0 0
  %1121 = vmatpush1.bf16.msra.mxu0 0
  %1122 = vmatprep.mubr.bf16.mxu0 0
  %1123 = vmatmul.mubr.bf16.gmra.mrb[0].mxu0 %v1088
  %v1124 = vpop.f32.mrb[0].mxu0
  %v1125 = vadd.f32 %v1029, %v1124
  %v1126 = vpop.f32.mrb[0].mxu0
  %v1127 = vadd.f32 %v1033, %v1126
  %v1128 = vpop.f32.mrb[0].mxu0
  %v1129 = vpop.f32.mrb[0].mxu0
  %1130 = vdwg.mxu0
  %1131 = vmatprep.subr.bf16.mxu0 %v1073
  %1132 = vmatpush1.bf16.msra.mxu0 %v1072
  %1133 = vmatprep.subr.bf16.mxu0 %v1077
  %1134 = vmatpush1.bf16.msra.mxu0 %v1076
  %1135 = vmatprep.subr.bf16.mxu0 0
  %1136 = vmatpush1.bf16.msra.mxu0 0
  %1137 = vmatprep.subr.bf16.mxu0 0
  %1138 = vmatpush1.bf16.msra.mxu0 0
  %1139 = vmatprep.subr.bf16.mxu0 0
  %1140 = vmatpush1.bf16.msra.mxu0 0
  %1141 = vmatprep.subr.bf16.mxu0 0
  %1142 = vmatpush1.bf16.msra.mxu0 0
  %1143 = vmatprep.subr.bf16.mxu0 0
  %1144 = vmatpush1.bf16.msra.mxu0 0
  %1145 = vmatprep.subr.bf16.mxu0 0
  %1146 = vmatpush1.bf16.msra.mxu0 0
  %1147 = vmatprep.subr.bf16.mxu0 0
  %1148 = vmatpush1.bf16.msra.mxu0 0
  %1149 = vmatprep.subr.bf16.mxu0 0
  %1150 = vmatpush1.bf16.msra.mxu0 0
  %1151 = vmatprep.subr.bf16.mxu0 0
  %1152 = vmatpush1.bf16.msra.mxu0 0
  %1153 = vmatprep.subr.bf16.mxu0 0
  %1154 = vmatpush1.bf16.msra.mxu0 0
  %1155 = vmatprep.subr.bf16.mxu0 0
  %1156 = vmatpush1.bf16.msra.mxu0 0
  %1157 = vmatprep.subr.bf16.mxu0 0
  %1158 = vmatpush1.bf16.msra.mxu0 0
  %1159 = vmatprep.subr.bf16.mxu0 0
  %1160 = vmatpush1.bf16.msra.mxu0 0
  %1161 = vmatprep.subr.bf16.mxu0 0
  %1162 = vmatpush1.bf16.msra.mxu0 0
  %1163 = vmatprep.mubr.bf16.mxu0 0
  %1164 = vmatmul.mubr.bf16.gmra.mrb[0].mxu0 %v1088
  %v1165 = vpop.f32.mrb[0].mxu0
  %v1166 = vadd.f32 %v1037, %v1165
  %v1167 = vpop.f32.mrb[0].mxu0
  %v1168 = vadd.f32 %v1041, %v1167
  %v1169 = vpop.f32.mrb[0].mxu0
  %v1170 = vpop.f32.mrb[0].mxu0
  %1171 = vdwg.mxu0
  %v1172 = vmax.f32 %v1125, 0.0
  %v1173 = vmax.f32 %v1127, 0.0
  %v1174 = vmax.f32 %v1166, 0.0
  %v1175 = vmax.f32 %v1168, 0.0
  %v1176 = vpack.c.bf16 %v1172, %v1172
  %v1177 = vpack.c.bf16 %v1173, %v1173
  %v1178 = vld [vmem:[%s9] sm:$0xff]
  %v1179 = vld [vmem:[%s9 + $0x8] sm:$0xff]
  %v1180 = vld [vmem:[%s9 + $0x10] sm:$0xff]
  %v1181 = vld [vmem:[%s9 + $0x18] sm:$0xff]
  %v1182 = vld [vmem:[%s9 + $0x20] sm:$0xff]
  %v1183 = vld [vmem:[%s9 + $0x28] sm:$0xff]
  %v1184 = vld [vmem:[%s9 + $0x30] sm:$0xff]
  %v1185 = vld [vmem:[%s9 + $0x38] sm:$0xff]
  %v1186 = vld [vmem:[%s9 + $0x40] sm:$0xff]
  %v1187 = vld [vmem:[%s9 + $0x48] sm:$0xff]
  %v1188 = vld [vmem:[%s9 + $0x50] sm:$0xff]
  %v1189 = vld [vmem:[%s9 + $0x58] sm:$0xff]
  %v1190 = vld [vmem:[%s9 + $0x60] sm:$0xff]
  %v1191 = vld [vmem:[%s9 + $0x68] sm:$0xff]
  %v1192 = vld [vmem:[%s9 + $0x70] sm:$0xff]
  %v1193 = vld [vmem:[%s9 + $0x78] sm:$0xff]
  %v1194 = vld [vmem:[%s9 + $0x80] sm:$0xff]
  %v1195 = vld [vmem:[%s9 + $0x88] sm:$0xff]
  %v1196 = vld [vmem:[%s9 + $0x90] sm:$0xff]
  %v1197 = vld [vmem:[%s9 + $0x98] sm:$0xff]
  %v1198 = vld [vmem:[%s9 + $0xa0] sm:$0xff]
  %v1199 = vld [vmem:[%s9 + $0xa8] sm:$0xff]
  %v1200 = vld [vmem:[%s9 + $0xb0] sm:$0xff]
  %v1201 = vld [vmem:[%s9 + $0xb8] sm:$0xff]
  %v1202 = vld [vmem:[%s9 + $0xc0] sm:$0xff]
  %v1203 = vld [vmem:[%s9 + $0xc8] sm:$0xff]
  %v1204 = vld [vmem:[%s9 + $0xd0] sm:$0xff]
  %v1205 = vld [vmem:[%s9 + $0xd8] sm:$0xff]
  %v1206 = vld [vmem:[%s9 + $0xe0] sm:$0xff]
  %v1207 = vld [vmem:[%s9 + $0xe8] sm:$0xff]
  %v1208 = vld [vmem:[%s9 + $0xf0] sm:$0xff]
  %v1209 = vld [vmem:[%s9 + $0xf8] sm:$0xff]
  %v1210 = vld [vmem:[%s9 + $0x100] sm:$0xff]
  %v1211 = vld [vmem:[%s9 + $0x108] sm:$0xff]
  %v1212 = vld [vmem:[%s9 + $0x110] sm:$0xff]
  %v1213 = vld [vmem:[%s9 + $0x118] sm:$0xff]
  %v1214 = vld [vmem:[%s9 + $0x120] sm:$0xff]
  %v1215 = vld [vmem:[%s9 + $0x128] sm:$0xff]
  %v1216 = vld [vmem:[%s9 + $0x130] sm:$0xff]
  %v1217 = vld [vmem:[%s9 + $0x138] sm:$0xff]
  %v1218 = vld [vmem:[%s9 + $0x140] sm:$0xff]
  %v1219 = vld [vmem:[%s9 + $0x148] sm:$0xff]
  %v1220 = vld [vmem:[%s9 + $0x150] sm:$0xff]
  %v1221 = vld [vmem:[%s9 + $0x158] sm:$0xff]
  %v1222 = vld [vmem:[%s9 + $0x160] sm:$0xff]
  %v1223 = vld [vmem:[%s9 + $0x168] sm:$0xff]
  %v1224 = vld [vmem:[%s9 + $0x170] sm:$0xff]
  %v1225 = vld [vmem:[%s9 + $0x178] sm:$0xff]
  %v1226 = vld [vmem:[%s9 + $0x180] sm:$0xff]
  %v1227 = vld [vmem:[%s9 + $0x188] sm:$0xff]
  %v1228 = vld [vmem:[%s9 + $0x190] sm:$0xff]
  %v1229 = vld [vmem:[%s9 + $0x198] sm:$0xff]
  %v1230 = vld [vmem:[%s9 + $0x1a0] sm:$0xff]
  %v1231 = vld [vmem:[%s9 + $0x1a8] sm:$0xff]
  %v1232 = vld [vmem:[%s9 + $0x1b0] sm:$0xff]
  %v1233 = vld [vmem:[%s9 + $0x1b8] sm:$0xff]
  %v1234 = vld [vmem:[%s9 + $0x1c0] sm:$0xff]
  %v1235 = vld [vmem:[%s9 + $0x1c8] sm:$0xff]
  %v1236 = vld [vmem:[%s9 + $0x1d0] sm:$0xff]
  %v1237 = vld [vmem:[%s9 + $0x1d8] sm:$0xff]
  %v1238 = vld [vmem:[%s9 + $0x1e0] sm:$0xff]
  %v1239 = vld [vmem:[%s9 + $0x1e8] sm:$0xff]
  %v1240 = vld [vmem:[%s9 + $0x1f0] sm:$0xff]
  %v1241 = vld [vmem:[%s9 + $0x1f8] sm:$0xff]
  %v1242 = vld [vmem:[%s10] sm:$0xf]
  %v1244 = vlaneseq
  %v1245 = vshrl.u32 %v1244, 7
  %v1246 = vsub.s32 0, %v1245
  %v1247 = vrot.slane %v1242, %v1246
  %v1248 = vlaneseq
  %v1249 = vshrl.u32 %v1248, 7
  %v1250 = vsub.s32 1, %v1249
  %v1251 = vrot.slane %v1242, %v1250
  %v1252 = vlaneseq
  %v1253 = vshrl.u32 %v1252, 7
  %v1254 = vsub.s32 2, %v1253
  %v1255 = vrot.slane %v1242, %v1254
  %v1256 = vlaneseq
  %v1257 = vshrl.u32 %v1256, 7
  %v1258 = vsub.s32 3, %v1257
  %v1259 = vrot.slane %v1242, %v1258
  %v1328 = vunpack.c.l.b16 %v1178
  %v1329 = vunpack.c.h.b16 %v1178
  %v1330 = vunpack.c.l.b16 %v1179
  %v1331 = vunpack.c.h.b16 %v1179
  %v1332 = vunpack.c.l.b16 %v1180
  %v1333 = vunpack.c.h.b16 %v1180
  %v1334 = vunpack.c.l.b16 %v1181
  %v1335 = vunpack.c.h.b16 %v1181
  %v1336 = vunpack.c.l.b16 %v1182
  %v1337 = vunpack.c.h.b16 %v1182
  %v1338 = vunpack.c.l.b16 %v1183
  %v1339 = vunpack.c.h.b16 %v1183
  %v1340 = vunpack.c.l.b16 %v1184
  %v1341 = vunpack.c.h.b16 %v1184
  %v1342 = vunpack.c.l.b16 %v1185
  %v1343 = vunpack.c.h.b16 %v1185
  %v1344 = vunpack.c.l.b16 %v1186
  %v1345 = vunpack.c.h.b16 %v1186
  %v1346 = vunpack.c.l.b16 %v1187
  %v1347 = vunpack.c.h.b16 %v1187
  %v1348 = vunpack.c.l.b16 %v1188
  %v1349 = vunpack.c.h.b16 %v1188
  %v1350 = vunpack.c.l.b16 %v1189
  %v1351 = vunpack.c.h.b16 %v1189
  %v1352 = vunpack.c.l.b16 %v1190
  %v1353 = vunpack.c.h.b16 %v1190
  %v1354 = vunpack.c.l.b16 %v1191
  %v1355 = vunpack.c.h.b16 %v1191
  %v1356 = vunpack.c.l.b16 %v1192
  %v1357 = vunpack.c.h.b16 %v1192
  %v1358 = vunpack.c.l.b16 %v1193
  %v1359 = vunpack.c.h.b16 %v1193
  %v1360 = vunpack.c.l.b16 %v1194
  %v1361 = vunpack.c.h.b16 %v1194
  %v1362 = vunpack.c.l.b16 %v1195
  %v1363 = vunpack.c.h.b16 %v1195
  %v1364 = vunpack.c.l.b16 %v1196
  %v1365 = vunpack.c.h.b16 %v1196
  %v1366 = vunpack.c.l.b16 %v1197
  %v1367 = vunpack.c.h.b16 %v1197
  %v1368 = vunpack.c.l.b16 %v1198
  %v1369 = vunpack.c.h.b16 %v1198
  %v1370 = vunpack.c.l.b16 %v1199
  %v1371 = vunpack.c.h.b16 %v1199
  %v1372 = vunpack.c.l.b16 %v1200
  %v1373 = vunpack.c.h.b16 %v1200
  %v1374 = vunpack.c.l.b16 %v1201
  %v1375 = vunpack.c.h.b16 %v1201
  %v1376 = vunpack.c.l.b16 %v1202
  %v1377 = vunpack.c.h.b16 %v1202
  %v1378 = vunpack.c.l.b16 %v1203
  %v1379 = vunpack.c.h.b16 %v1203
  %v1380 = vunpack.c.l.b16 %v1204
  %v1381 = vunpack.c.h.b16 %v1204
  %v1382 = vunpack.c.l.b16 %v1205
  %v1383 = vunpack.c.h.b16 %v1205
  %v1384 = vunpack.c.l.b16 %v1206
  %v1385 = vunpack.c.h.b16 %v1206
  %v1386 = vunpack.c.l.b16 %v1207
  %v1387 = vunpack.c.h.b16 %v1207
  %v1388 = vunpack.c.l.b16 %v1208
  %v1389 = vunpack.c.h.b16 %v1208
  %v1390 = vunpack.c.l.b16 %v1209
  %v1391 = vunpack.c.h.b16 %v1209
  %v1392 = vunpack.c.l.b16 %v1210
  %v1393 = vunpack.c.h.b16 %v1210
  %v1394 = vunpack.c.l.b16 %v1211
  %v1395 = vunpack.c.h.b16 %v1211
  %v1396 = vunpack.c.l.b16 %v1212
  %v1397 = vunpack.c.h.b16 %v1212
  %v1398 = vunpack.c.l.b16 %v1213
  %v1399 = vunpack.c.h.b16 %v1213
  %v1400 = vunpack.c.l.b16 %v1214
  %v1401 = vunpack.c.h.b16 %v1214
  %v1402 = vunpack.c.l.b16 %v1215
  %v1403 = vunpack.c.h.b16 %v1215
  %v1404 = vunpack.c.l.b16 %v1216
  %v1405 = vunpack.c.h.b16 %v1216
  %v1406 = vunpack.c.l.b16 %v1217
  %v1407 = vunpack.c.h.b16 %v1217
  %v1408 = vunpack.c.l.b16 %v1218
  %v1409 = vunpack.c.h.b16 %v1218
  %v1410 = vunpack.c.l.b16 %v1219
  %v1411 = vunpack.c.h.b16 %v1219
  %v1412 = vunpack.c.l.b16 %v1220
  %v1413 = vunpack.c.h.b16 %v1220
  %v1414 = vunpack.c.l.b16 %v1221
  %v1415 = vunpack.c.h.b16 %v1221
  %v1416 = vunpack.c.l.b16 %v1222
  %v1417 = vunpack.c.h.b16 %v1222
  %v1418 = vunpack.c.l.b16 %v1223
  %v1419 = vunpack.c.h.b16 %v1223
  %v1420 = vunpack.c.l.b16 %v1224
  %v1421 = vunpack.c.h.b16 %v1224
  %v1422 = vunpack.c.l.b16 %v1225
  %v1423 = vunpack.c.h.b16 %v1225
  %v1424 = vunpack.c.l.b16 %v1226
  %v1425 = vunpack.c.h.b16 %v1226
  %v1426 = vunpack.c.l.b16 %v1227
  %v1427 = vunpack.c.h.b16 %v1227
  %v1428 = vunpack.c.l.b16 %v1228
  %v1429 = vunpack.c.h.b16 %v1228
  %v1430 = vunpack.c.l.b16 %v1229
  %v1431 = vunpack.c.h.b16 %v1229
  %v1432 = vunpack.c.l.b16 %v1230
  %v1433 = vunpack.c.h.b16 %v1230
  %v1434 = vunpack.c.l.b16 %v1231
  %v1435 = vunpack.c.h.b16 %v1231
  %v1436 = vunpack.c.l.b16 %v1232
  %v1437 = vunpack.c.h.b16 %v1232
  %v1438 = vunpack.c.l.b16 %v1233
  %v1439 = vunpack.c.h.b16 %v1233
  %v1440 = vunpack.c.l.b16 %v1234
  %v1441 = vunpack.c.h.b16 %v1234
  %v1442 = vunpack.c.l.b16 %v1235
  %v1443 = vunpack.c.h.b16 %v1235
  %v1444 = vunpack.c.l.b16 %v1236
  %v1445 = vunpack.c.h.b16 %v1236
  %v1446 = vunpack.c.l.b16 %v1237
  %v1447 = vunpack.c.h.b16 %v1237
  %v1448 = vunpack.c.l.b16 %v1238
  %v1449 = vunpack.c.h.b16 %v1238
  %v1450 = vunpack.c.l.b16 %v1239
  %v1451 = vunpack.c.h.b16 %v1239
  %v1452 = vunpack.c.l.b16 %v1240
  %v1453 = vunpack.c.h.b16 %v1240
  %v1454 = vunpack.c.l.b16 %v1241
  %v1455 = vunpack.c.h.b16 %v1241
  %v1456 = vpack.c.b16 %v1332, %v1328
  %v1457 = vpack.c.b16 %v1333, %v1329
  %v1458 = vpack.c.b16 %v1334, %v1330
  %v1459 = vpack.c.b16 %v1335, %v1331
  %v1460 = vpack.c.b16 %v1340, %v1336
  %v1461 = vpack.c.b16 %v1341, %v1337
  %v1462 = vpack.c.b16 %v1342, %v1338
  %v1463 = vpack.c.b16 %v1343, %v1339
  %v1464 = vpack.c.b16 %v1348, %v1344
  %v1465 = vpack.c.b16 %v1349, %v1345
  %v1466 = vpack.c.b16 %v1350, %v1346
  %v1467 = vpack.c.b16 %v1351, %v1347
  %v1468 = vpack.c.b16 %v1356, %v1352
  %v1469 = vpack.c.b16 %v1357, %v1353
  %v1470 = vpack.c.b16 %v1358, %v1354
  %v1471 = vpack.c.b16 %v1359, %v1355
  %v1472 = vpack.c.b16 %v1364, %v1360
  %v1473 = vpack.c.b16 %v1365, %v1361
  %v1474 = vpack.c.b16 %v1366, %v1362
  %v1475 = vpack.c.b16 %v1367, %v1363
  %v1476 = vpack.c.b16 %v1372, %v1368
  %v1477 = vpack.c.b16 %v1373, %v1369
  %v1478 = vpack.c.b16 %v1374, %v1370
  %v1479 = vpack.c.b16 %v1375, %v1371
  %v1480 = vpack.c.b16 %v1380, %v1376
  %v1481 = vpack.c.b16 %v1381, %v1377
  %v1482 = vpack.c.b16 %v1382, %v1378
  %v1483 = vpack.c.b16 %v1383, %v1379
  %v1484 = vpack.c.b16 %v1388, %v1384
  %v1485 = vpack.c.b16 %v1389, %v1385
  %v1486 = vpack.c.b16 %v1390, %v1386
  %v1487 = vpack.c.b16 %v1391, %v1387
  %v1488 = vpack.c.b16 %v1396, %v1392
  %v1489 = vpack.c.b16 %v1397, %v1393
  %v1490 = vpack.c.b16 %v1398, %v1394
  %v1491 = vpack.c.b16 %v1399, %v1395
  %v1492 = vpack.c.b16 %v1404, %v1400
  %v1493 = vpack.c.b16 %v1405, %v1401
  %v1494 = vpack.c.b16 %v1406, %v1402
  %v1495 = vpack.c.b16 %v1407, %v1403
  %v1496 = vpack.c.b16 %v1412, %v1408
  %v1497 = vpack.c.b16 %v1413, %v1409
  %v1498 = vpack.c.b16 %v1414, %v1410
  %v1499 = vpack.c.b16 %v1415, %v1411
  %v1500 = vpack.c.b16 %v1420, %v1416
  %v1501 = vpack.c.b16 %v1421, %v1417
  %v1502 = vpack.c.b16 %v1422, %v1418
  %v1503 = vpack.c.b16 %v1423, %v1419
  %v1504 = vpack.c.b16 %v1428, %v1424
  %v1505 = vpack.c.b16 %v1429, %v1425
  %v1506 = vpack.c.b16 %v1430, %v1426
  %v1507 = vpack.c.b16 %v1431, %v1427
  %v1508 = vpack.c.b16 %v1436, %v1432
  %v1509 = vpack.c.b16 %v1437, %v1433
  %v1510 = vpack.c.b16 %v1438, %v1434
  %v1511 = vpack.c.b16 %v1439, %v1435
  %v1512 = vpack.c.b16 %v1444, %v1440
  %v1513 = vpack.c.b16 %v1445, %v1441
  %v1514 = vpack.c.b16 %v1446, %v1442
  %v1515 = vpack.c.b16 %v1447, %v1443
  %v1516 = vpack.c.b16 %v1452, %v1448
  %v1517 = vpack.c.b16 %v1453, %v1449
  %v1518 = vpack.c.b16 %v1454, %v1450
  %v1519 = vpack.c.b16 %v1455, %v1451
  %1584 = vmatprep.subr.bf16.mxu0 %v1457
  %1585 = vmatpush1.bf16.msra.mxu0 %v1456
  %1586 = vmatprep.subr.bf16.mxu0 %v1461
  %1587 = vmatpush1.bf16.msra.mxu0 %v1460
  %1588 = vmatprep.subr.bf16.mxu0 %v1465
  %1589 = vmatpush1.bf16.msra.mxu0 %v1464
  %1590 = vmatprep.subr.bf16.mxu0 %v1469
  %1591 = vmatpush1.bf16.msra.mxu0 %v1468
  %1592 = vmatprep.subr.bf16.mxu0 %v1473
  %1593 = vmatpush1.bf16.msra.mxu0 %v1472
  %1594 = vmatprep.subr.bf16.mxu0 %v1477
  %1595 = vmatpush1.bf16.msra.mxu0 %v1476
  %1596 = vmatprep.subr.bf16.mxu0 %v1481
  %1597 = vmatpush1.bf16.msra.mxu0 %v1480
  %1598 = vmatprep.subr.bf16.mxu0 %v1485
  %1599 = vmatpush1.bf16.msra.mxu0 %v1484
  %1600 = vmatprep.subr.bf16.mxu0 %v1489
  %1601 = vmatpush1.bf16.msra.mxu0 %v1488
  %1602 = vmatprep.subr.bf16.mxu0 %v1493
  %1603 = vmatpush1.bf16.msra.mxu0 %v1492
  %1604 = vmatprep.subr.bf16.mxu0 %v1497
  %1605 = vmatpush1.bf16.msra.mxu0 %v1496
  %1606 = vmatprep.subr.bf16.mxu0 %v1501
  %1607 = vmatpush1.bf16.msra.mxu0 %v1500
  %1608 = vmatprep.subr.bf16.mxu0 %v1505
  %1609 = vmatpush1.bf16.msra.mxu0 %v1504
  %1610 = vmatprep.subr.bf16.mxu0 %v1509
  %1611 = vmatpush1.bf16.msra.mxu0 %v1508
  %1612 = vmatprep.subr.bf16.mxu0 %v1513
  %1613 = vmatpush1.bf16.msra.mxu0 %v1512
  %1614 = vmatprep.subr.bf16.mxu0 %v1517
  %1615 = vmatpush1.bf16.msra.mxu0 %v1516
  %1616 = vmatprep.mubr.bf16.mxu0 %v1177
  %1617 = vmatmul.mubr.bf16.gmra.mrb[0].mxu0 %v1176
  %v1618 = vpop.f32.mrb[0].mxu0
  %v1619 = vadd.f32 %v1247, %v1618
  %v1620 = vpop.f32.mrb[0].mxu0
  %v1621 = vadd.f32 %v1251, %v1620
  %v1622 = vpop.f32.mrb[0].mxu0
  %v1623 = vpop.f32.mrb[0].mxu0
  %1624 = vdwg.mxu0
  %1625 = vmatprep.subr.bf16.mxu0 %v1459
  %1626 = vmatpush1.bf16.msra.mxu0 %v1458
  %1627 = vmatprep.subr.bf16.mxu0 %v1463
  %1628 = vmatpush1.bf16.msra.mxu0 %v1462
  %1629 = vmatprep.subr.bf16.mxu0 %v1467
  %1630 = vmatpush1.bf16.msra.mxu0 %v1466
  %1631 = vmatprep.subr.bf16.mxu0 %v1471
  %1632 = vmatpush1.bf16.msra.mxu0 %v1470
  %1633 = vmatprep.subr.bf16.mxu0 %v1475
  %1634 = vmatpush1.bf16.msra.mxu0 %v1474
  %1635 = vmatprep.subr.bf16.mxu0 %v1479
  %1636 = vmatpush1.bf16.msra.mxu0 %v1478
  %1637 = vmatprep.subr.bf16.mxu0 %v1483
  %1638 = vmatpush1.bf16.msra.mxu0 %v1482
  %1639 = vmatprep.subr.bf16.mxu0 %v1487
  %1640 = vmatpush1.bf16.msra.mxu0 %v1486
  %1641 = vmatprep.subr.bf16.mxu0 %v1491
  %1642 = vmatpush1.bf16.msra.mxu0 %v1490
  %1643 = vmatprep.subr.bf16.mxu0 %v1495
  %1644 = vmatpush1.bf16.msra.mxu0 %v1494
  %1645 = vmatprep.subr.bf16.mxu0 %v1499
  %1646 = vmatpush1.bf16.msra.mxu0 %v1498
  %1647 = vmatprep.subr.bf16.mxu0 %v1503
  %1648 = vmatpush1.bf16.msra.mxu0 %v1502
  %1649 = vmatprep.subr.bf16.mxu0 %v1507
  %1650 = vmatpush1.bf16.msra.mxu0 %v1506
  %1651 = vmatprep.subr.bf16.mxu0 %v1511
  %1652 = vmatpush1.bf16.msra.mxu0 %v1510
  %1653 = vmatprep.subr.bf16.mxu0 %v1515
  %1654 = vmatpush1.bf16.msra.mxu0 %v1514
  %1655 = vmatprep.subr.bf16.mxu0 %v1519
  %1656 = vmatpush1.bf16.msra.mxu0 %v1518
  %1657 = vmatprep.mubr.bf16.mxu0 %v1177
  %1658 = vmatmul.mubr.bf16.gmra.mrb[0].mxu0 %v1176
  %v1659 = vpop.f32.mrb[0].mxu0
  %v1660 = vadd.f32 %v1255, %v1659
  %v1661 = vpop.f32.mrb[0].mxu0
  %v1662 = vadd.f32 %v1259, %v1661
  %v1663 = vpop.f32.mrb[0].mxu0
  %v1664 = vpop.f32.mrb[0].mxu0
  %1665 = vdwg.mxu0
  %v1666 = vmax.f32 %v1619, 0.0
  %v1667 = vmax.f32 %v1621, 0.0
  %v1668 = vmax.f32 %v1660, 0.0
  %v1669 = vmax.f32 %v1662, 0.0
  %v1670 = vpack.c.bf16 %v1174, %v1174
  %v1671 = vld [vmem:[%s11] sm:$0xf]
  %v1672 = vld [vmem:[%s11 + $0x4] sm:$0xf]
  %v1673 = vld [vmem:[%s11 + $0x8] sm:$0xf]
  %v1674 = vld [vmem:[%s11 + $0xc] sm:$0xf]
  %v1675 = vld [vmem:[%s11 + $0x10] sm:$0xf]
  %v1676 = vld [vmem:[%s11 + $0x14] sm:$0xf]
  %v1677 = vld [vmem:[%s11 + $0x18] sm:$0xf]
  %v1678 = vld [vmem:[%s11 + $0x1c] sm:$0xf]
  %v1679 = vld [vmem:[%s11 + $0x20] sm:$0xf]
  %v1680 = vld [vmem:[%s11 + $0x24] sm:$0xf]
  %v1681 = vld [vmem:[%s11 + $0x28] sm:$0xf]
  %v1682 = vld [vmem:[%s11 + $0x2c] sm:$0xf]
  %v1683 = vld [vmem:[%s11 + $0x30] sm:$0xf]
  %v1684 = vld [vmem:[%s11 + $0x34] sm:$0xf]
  %v1685 = vld [vmem:[%s11 + $0x38] sm:$0xf]
  %v1686 = vld [vmem:[%s11 + $0x3c] sm:$0xf]
  %v1687 = vld [vmem:[%s12] sm:$0x1]
  %v1689 = vlaneseq
  %v1690 = vshrl.u32 %v1689, 7
  %v1691 = vsub.s32 0, %v1690
  %v1692 = vrot.slane %v1687, %v1691
  %v1710 = vunpack.c.l.b16 %v1671
  %v1711 = vunpack.c.l.b16 %v1672
  %v1712 = vunpack.c.l.b16 %v1673
  %v1713 = vunpack.c.l.b16 %v1674
  %v1714 = vunpack.c.l.b16 %v1675
  %v1715 = vunpack.c.l.b16 %v1676
  %v1716 = vunpack.c.l.b16 %v1677
  %v1717 = vunpack.c.l.b16 %v1678
  %v1718 = vunpack.c.l.b16 %v1679
  %v1719 = vunpack.c.l.b16 %v1680
  %v1720 = vunpack.c.l.b16 %v1681
  %v1721 = vunpack.c.l.b16 %v1682
  %v1722 = vunpack.c.l.b16 %v1683
  %v1723 = vunpack.c.l.b16 %v1684
  %v1724 = vunpack.c.l.b16 %v1685
  %v1725 = vunpack.c.l.b16 %v1686
  %v1726 = vpack.c.b16 %v1711, %v1710
  %v1727 = vpack.c.b16 %v1713, %v1712
  %v1728 = vpack.c.b16 %v1715, %v1714
  %v1729 = vpack.c.b16 %v1717, %v1716
  %v1730 = vpack.c.b16 %v1719, %v1718
  %v1731 = vpack.c.b16 %v1721, %v1720
  %v1732 = vpack.c.b16 %v1723, %v1722
  %v1733 = vpack.c.b16 %v1725, %v1724
  %1742 = vmatprep.subr.bf16.mxu0 0
  %1743 = vmatpush1.bf16.msra.mxu0 %v1726
  %1744 = vmatprep.subr.bf16.mxu0 0
  %1745 = vmatpush1.bf16.msra.mxu0 %v1727
  %1746 = vmatprep.subr.bf16.mxu0 0
  %1747 = vmatpush1.bf16.msra.mxu0 %v1728
  %1748 = vmatprep.subr.bf16.mxu0 0
  %1749 = vmatpush1.bf16.msra.mxu0 %v1729
  %1750 = vmatprep.subr.bf16.mxu0 0
  %1751 = vmatpush1.bf16.msra.mxu0 %v1730
  %1752 = vmatprep.subr.bf16.mxu0 0
  %1753 = vmatpush1.bf16.msra.mxu0 %v1731
  %1754 = vmatprep.subr.bf16.mxu0 0
  %1755 = vmatpush1.bf16.msra.mxu0 %v1732
  %1756 = vmatprep.subr.bf16.mxu0 0
  %1757 = vmatpush1.bf16.msra.mxu0 %v1733
  %1758 = vmatprep.subr.bf16.mxu0 0
  %1759 = vmatpush1.bf16.msra.mxu0 0
  %1760 = vmatprep.subr.bf16.mxu0 0
  %1761 = vmatpush1.bf16.msra.mxu0 0
  %1762 = vmatprep.subr.bf16.mxu0 0
  %1763 = vmatpush1.bf16.msra.mxu0 0
  %1764 = vmatprep.subr.bf16.mxu0 0
  %1765 = vmatpush1.bf16.msra.mxu0 0
  %1766 = vmatprep.subr.bf16.mxu0 0
  %1767 = vmatpush1.bf16.msra.mxu0 0
  %1768 = vmatprep.subr.bf16.mxu0 0
  %1769 = vmatpush1.bf16.msra.mxu0 0
  %1770 = vmatprep.subr.bf16.mxu0 0
  %1771 = vmatpush1.bf16.msra.mxu0 0
  %1772 = vmatprep.subr.bf16.mxu0 0
  %1773 = vmatpush1.bf16.msra.mxu0 0
  %1774 = vmatprep.mubr.bf16.mxu0 0
  %1775 = vmatmul.mubr.bf16.gmra.mrb[0].mxu0 %v1670
  %v1776 = vpop.f32.mrb[0].mxu0
  %v1777 = vadd.f32 %v1692, %v1776
  %v1778 = vpop.f32.mrb[0].mxu0
  %v1779 = vpop.f32.mrb[0].mxu0
  %v1780 = vpop.f32.mrb[0].mxu0
  %1781 = vdwg.mxu0
  %v1782 = vmax.f32 %v1777, 0.0
  %1784 = vrot.lane.b32.xlu0 %v1175, 64
  %v1785 = vpop.permute.xlu0 %1784
  %vm1787 = vcmask 523264
  %v1788 = vsel %vm1787, %v1782, %v1785
  %v1789 = vpack.c.bf16 %v1666, %v1666
  %v1790 = vpack.c.bf16 %v1667, %v1667
  %v1791 = vpack.c.bf16 %v1668, %v1668
  %v1792 = vpack.c.bf16 %v1669, %v1669
  %v1793 = vpack.c.bf16 %v1788, %v1788
  %v1794 = vld [vmem:[%s13] sm:$0xf]
  %v1795 = vld [vmem:[%s13 + $0x4] sm:$0xf]
  %v1796 = vld [vmem:[%s13 + $0x8] sm:$0xf]
  %v1797 = vld [vmem:[%s13 + $0xc] sm:$0xf]
  %v1798 = vld [vmem:[%s13 + $0x10] sm:$0xf]
  %v1799 = vld [vmem:[%s13 + $0x14] sm:$0xf]
  %v1800 = vld [vmem:[%s13 + $0x18] sm:$0xf]
  %v1801 = vld [vmem:[%s13 + $0x1c] sm:$0xf]
  %v1802 = vld [vmem:[%s13 + $0x20] sm:$0xf]
  %v1803 = vld [vmem:[%s13 + $0x24] sm:$0xf]
  %v1804 = vld [vmem:[%s13 + $0x28] sm:$0xf]
  %v1805 = vld [vmem:[%s13 + $0x2c] sm:$0xf]
  %v1806 = vld [vmem:[%s13 + $0x30] sm:$0xf]
  %v1807 = vld [vmem:[%s13 + $0x34] sm:$0xf]
  %v1808 = vld [vmem:[%s13 + $0x38] sm:$0xf]
  %v1809 = vld [vmem:[%s13 + $0x3c] sm:$0xf]
  %v1810 = vld [vmem:[%s13 + $0x40] sm:$0xf]
  %v1811 = vld [vmem:[%s13 + $0x44] sm:$0xf]
  %v1812 = vld [vmem:[%s13 + $0x48] sm:$0xf]
  %v1813 = vld [vmem:[%s13 + $0x4c] sm:$0xf]
  %v1814 = vld [vmem:[%s13 + $0x50] sm:$0xf]
  %v1815 = vld [vmem:[%s13 + $0x54] sm:$0xf]
  %v1816 = vld [vmem:[%s13 + $0x58] sm:$0xf]
  %v1817 = vld [vmem:[%s13 + $0x5c] sm:$0xf]
  %v1818 = vld [vmem:[%s13 + $0x60] sm:$0xf]
  %v1819 = vld [vmem:[%s13 + $0x64] sm:$0xf]
  %v1820 = vld [vmem:[%s13 + $0x68] sm:$0xf]
  %v1821 = vld [vmem:[%s13 + $0x6c] sm:$0xf]
  %v1822 = vld [vmem:[%s13 + $0x70] sm:$0xf]
  %v1823 = vld [vmem:[%s13 + $0x74] sm:$0xf]
  %v1824 = vld [vmem:[%s13 + $0x78] sm:$0xf]
  %v1825 = vld [vmem:[%s13 + $0x7c] sm:$0xf]
  %v1826 = vld [vmem:[%s13 + $0x80] sm:$0xf]
  %v1827 = vld [vmem:[%s13 + $0x84] sm:$0xf]
  %v1828 = vld [vmem:[%s13 + $0x88] sm:$0xf]
  %v1829 = vld [vmem:[%s13 + $0x8c] sm:$0xf]
  %v1830 = vld [vmem:[%s13 + $0x90] sm:$0xf]
  %v1831 = vld [vmem:[%s13 + $0x94] sm:$0xf]
  %v1832 = vld [vmem:[%s13 + $0x98] sm:$0xf]
  %v1833 = vld [vmem:[%s13 + $0x9c] sm:$0xf]
  %v1834 = vld [vmem:[%s13 + $0xa0] sm:$0xf]
  %v1835 = vld [vmem:[%s13 + $0xa4] sm:$0xf]
  %v1836 = vld [vmem:[%s13 + $0xa8] sm:$0xf]
  %v1837 = vld [vmem:[%s13 + $0xac] sm:$0xf]
  %v1838 = vld [vmem:[%s13 + $0xb0] sm:$0xf]
  %v1839 = vld [vmem:[%s13 + $0xb4] sm:$0xf]
  %v1840 = vld [vmem:[%s13 + $0xb8] sm:$0xf]
  %v1841 = vld [vmem:[%s13 + $0xbc] sm:$0xf]
  %v1842 = vld [vmem:[%s13 + $0xc0] sm:$0xf]
  %v1843 = vld [vmem:[%s13 + $0xc4] sm:$0xf]
  %v1844 = vld [vmem:[%s13 + $0xc8] sm:$0xf]
  %v1845 = vld [vmem:[%s13 + $0xcc] sm:$0xf]
  %v1846 = vld [vmem:[%s13 + $0xd0] sm:$0xf]
  %v1847 = vld [vmem:[%s13 + $0xd4] sm:$0xf]
  %v1848 = vld [vmem:[%s13 + $0xd8] sm:$0xf]
  %v1849 = vld [vmem:[%s13 + $0xdc] sm:$0xf]
  %v1850 = vld [vmem:[%s13 + $0xe0] sm:$0xf]
  %v1851 = vld [vmem:[%s13 + $0xe4] sm:$0xf]
  %v1852 = vld [vmem:[%s13 + $0xe8] sm:$0xf]
  %v1853 = vld [vmem:[%s13 + $0xec] sm:$0xf]
  %v1854 = vld [vmem:[%s13 + $0xf0] sm:$0xf]
  %v1855 = vld [vmem:[%s13 + $0xf4] sm:$0xf]
  %v1856 = vld [vmem:[%s13 + $0xf8] sm:$0xf]
  %v1857 = vld [vmem:[%s13 + $0xfc] sm:$0xf]
  %v1858 = vld [vmem:[%s13 + $0x100] sm:$0xf]
  %v1859 = vld [vmem:[%s13 + $0x104] sm:$0xf]
  %v1860 = vld [vmem:[%s13 + $0x108] sm:$0xf]
  %v1861 = vld [vmem:[%s13 + $0x10c] sm:$0xf]
  %v1862 = vld [vmem:[%s13 + $0x110] sm:$0xf]
  %v1863 = vld [vmem:[%s13 + $0x114] sm:$0xf]
  %v1864 = vld [vmem:[%s13 + $0x118] sm:$0xf]
  %v1865 = vld [vmem:[%s13 + $0x11c] sm:$0xf]
  %v1866 = vld [vmem:[%s13 + $0x120] sm:$0xf]
  %v1867 = vld [vmem:[%s13 + $0x124] sm:$0xf]
  %v1868 = vld [vmem:[%s13 + $0x128] sm:$0xf]
  %v1869 = vld [vmem:[%s13 + $0x12c] sm:$0xf]
  %v1870 = vld [vmem:[%s13 + $0x130] sm:$0xf]
  %v1871 = vld [vmem:[%s13 + $0x134] sm:$0xf]
  %v1872 = vld [vmem:[%s13 + $0x138] sm:$0xf]
  %v1873 = vld [vmem:[%s13 + $0x13c] sm:$0xf]
  %v1874 = vld [vmem:[%s14] sm:$0x1]
  %v1876 = vlaneseq
  %v1877 = vshrl.u32 %v1876, 7
  %v1878 = vsub.s32 0, %v1877
  %v1879 = vrot.slane %v1874, %v1878
  %v1961 = vunpack.c.l.b16 %v1794
  %v1962 = vunpack.c.l.b16 %v1795
  %v1963 = vunpack.c.l.b16 %v1796
  %v1964 = vunpack.c.l.b16 %v1797
  %v1965 = vunpack.c.l.b16 %v1798
  %v1966 = vunpack.c.l.b16 %v1799
  %v1967 = vunpack.c.l.b16 %v1800
  %v1968 = vunpack.c.l.b16 %v1801
  %v1969 = vunpack.c.l.b16 %v1802
  %v1970 = vunpack.c.l.b16 %v1803
  %v1971 = vunpack.c.l.b16 %v1804
  %v1972 = vunpack.c.l.b16 %v1805
  %v1973 = vunpack.c.l.b16 %v1806
  %v1974 = vunpack.c.l.b16 %v1807
  %v1975 = vunpack.c.l.b16 %v1808
  %v1976 = vunpack.c.l.b16 %v1809
  %v1977 = vunpack.c.l.b16 %v1810
  %v1978 = vunpack.c.l.b16 %v1811
  %v1979 = vunpack.c.l.b16 %v1812
  %v1980 = vunpack.c.l.b16 %v1813
  %v1981 = vunpack.c.l.b16 %v1814
  %v1982 = vunpack.c.l.b16 %v1815
  %v1983 = vunpack.c.l.b16 %v1816
  %v1984 = vunpack.c.l.b16 %v1817
  %v1985 = vunpack.c.l.b16 %v1818
  %v1986 = vunpack.c.l.b16 %v1819
  %v1987 = vunpack.c.l.b16 %v1820
  %v1988 = vunpack.c.l.b16 %v1821
  %v1989 = vunpack.c.l.b16 %v1822
  %v1990 = vunpack.c.l.b16 %v1823
  %v1991 = vunpack.c.l.b16 %v1824
  %v1992 = vunpack.c.l.b16 %v1825
  %v1993 = vunpack.c.l.b16 %v1826
  %v1994 = vunpack.c.l.b16 %v1827
  %v1995 = vunpack.c.l.b16 %v1828
  %v1996 = vunpack.c.l.b16 %v1829
  %v1997 = vunpack.c.l.b16 %v1830
  %v1998 = vunpack.c.l.b16 %v1831
  %v1999 = vunpack.c.l.b16 %v1832
  %v2000 = vunpack.c.l.b16 %v1833
  %v2001 = vunpack.c.l.b16 %v1834
  %v2002 = vunpack.c.l.b16 %v1835
  %v2003 = vunpack.c.l.b16 %v1836
  %v2004 = vunpack.c.l.b16 %v1837
  %v2005 = vunpack.c.l.b16 %v1838
  %v2006 = vunpack.c.l.b16 %v1839
  %v2007 = vunpack.c.l.b16 %v1840
  %v2008 = vunpack.c.l.b16 %v1841
  %v2009 = vunpack.c.l.b16 %v1842
  %v2010 = vunpack.c.l.b16 %v1843
  %v2011 = vunpack.c.l.b16 %v1844
  %v2012 = vunpack.c.l.b16 %v1845
  %v2013 = vunpack.c.l.b16 %v1846
  %v2014 = vunpack.c.l.b16 %v1847
  %v2015 = vunpack.c.l.b16 %v1848
  %v2016 = vunpack.c.l.b16 %v1849
  %v2017 = vunpack.c.l.b16 %v1850
  %v2018 = vunpack.c.l.b16 %v1851
  %v2019 = vunpack.c.l.b16 %v1852
  %v2020 = vunpack.c.l.b16 %v1853
  %v2021 = vunpack.c.l.b16 %v1854
  %v2022 = vunpack.c.l.b16 %v1855
  %v2023 = vunpack.c.l.b16 %v1856
  %v2024 = vunpack.c.l.b16 %v1857
  %v2025 = vunpack.c.l.b16 %v1858
  %v2026 = vunpack.c.l.b16 %v1859
  %v2027 = vunpack.c.l.b16 %v1860
  %v2028 = vunpack.c.l.b16 %v1861
  %v2029 = vunpack.c.l.b16 %v1862
  %v2030 = vunpack.c.l.b16 %v1863
  %v2031 = vunpack.c.l.b16 %v1864
  %v2032 = vunpack.c.l.b16 %v1865
  %v2033 = vunpack.c.l.b16 %v1866
  %v2034 = vunpack.c.l.b16 %v1867
  %v2035 = vunpack.c.l.b16 %v1868
  %v2036 = vunpack.c.l.b16 %v1869
  %v2037 = vunpack.c.l.b16 %v1870
  %v2038 = vunpack.c.l.b16 %v1871
  %v2039 = vunpack.c.l.b16 %v1872
  %v2040 = vunpack.c.l.b16 %v1873
  %v2041 = vpack.c.b16 %v1962, %v1961
  %v2042 = vpack.c.b16 %v1964, %v1963
  %v2043 = vpack.c.b16 %v1966, %v1965
  %v2044 = vpack.c.b16 %v1968, %v1967
  %v2045 = vpack.c.b16 %v1970, %v1969
  %v2046 = vpack.c.b16 %v1972, %v1971
  %v2047 = vpack.c.b16 %v1974, %v1973
  %v2048 = vpack.c.b16 %v1976, %v1975
  %v2049 = vpack.c.b16 %v1978, %v1977
  %v2050 = vpack.c.b16 %v1980, %v1979
  %v2051 = vpack.c.b16 %v1982, %v1981
  %v2052 = vpack.c.b16 %v1984, %v1983
  %v2053 = vpack.c.b16 %v1986, %v1985
  %v2054 = vpack.c.b16 %v1988, %v1987
  %v2055 = vpack.c.b16 %v1990, %v1989
  %v2056 = vpack.c.b16 %v1992, %v1991
  %v2057 = vpack.c.b16 %v1994, %v1993
  %v2058 = vpack.c.b16 %v1996, %v1995
  %v2059 = vpack.c.b16 %v1998, %v1997
  %v2060 = vpack.c.b16 %v2000, %v1999
  %v2061 = vpack.c.b16 %v2002, %v2001
  %v2062 = vpack.c.b16 %v2004, %v2003
  %v2063 = vpack.c.b16 %v2006, %v2005
  %v2064 = vpack.c.b16 %v2008, %v2007
  %v2065 = vpack.c.b16 %v2010, %v2009
  %v2066 = vpack.c.b16 %v2012, %v2011
  %v2067 = vpack.c.b16 %v2014, %v2013
  %v2068 = vpack.c.b16 %v2016, %v2015
  %v2069 = vpack.c.b16 %v2018, %v2017
  %v2070 = vpack.c.b16 %v2020, %v2019
  %v2071 = vpack.c.b16 %v2022, %v2021
  %v2072 = vpack.c.b16 %v2024, %v2023
  %v2073 = vpack.c.b16 %v2026, %v2025
  %v2074 = vpack.c.b16 %v2028, %v2027
  %v2075 = vpack.c.b16 %v2030, %v2029
  %v2076 = vpack.c.b16 %v2032, %v2031
  %v2077 = vpack.c.b16 %v2034, %v2033
  %v2078 = vpack.c.b16 %v2036, %v2035
  %v2079 = vpack.c.b16 %v2038, %v2037
  %v2080 = vpack.c.b16 %v2040, %v2039
  %2121 = vmatprep.subr.bf16.mxu0 0
  %2122 = vmatpush1.bf16.msra.mxu0 %v2041
  %2123 = vmatprep.subr.bf16.mxu0 0
  %2124 = vmatpush1.bf16.msra.mxu0 %v2042
  %2125 = vmatprep.subr.bf16.mxu0 0
  %2126 = vmatpush1.bf16.msra.mxu0 %v2043
  %2127 = vmatprep.subr.bf16.mxu0 0
  %2128 = vmatpush1.bf16.msra.mxu0 %v2044
  %2129 = vmatprep.subr.bf16.mxu0 0
  %2130 = vmatpush1.bf16.msra.mxu0 %v2045
  %2131 = vmatprep.subr.bf16.mxu0 0
  %2132 = vmatpush1.bf16.msra.mxu0 %v2046
  %2133 = vmatprep.subr.bf16.mxu0 0
  %2134 = vmatpush1.bf16.msra.mxu0 %v2047
  %2135 = vmatprep.subr.bf16.mxu0 0
  %2136 = vmatpush1.bf16.msra.mxu0 %v2048
  %2137 = vmatprep.subr.bf16.mxu0 0
  %2138 = vmatpush1.bf16.msra.mxu0 %v2049
  %2139 = vmatprep.subr.bf16.mxu0 0
  %2140 = vmatpush1.bf16.msra.mxu0 %v2050
  %2141 = vmatprep.subr.bf16.mxu0 0
  %2142 = vmatpush1.bf16.msra.mxu0 %v2051
  %2143 = vmatprep.subr.bf16.mxu0 0
  %2144 = vmatpush1.bf16.msra.mxu0 %v2052
  %2145 = vmatprep.subr.bf16.mxu0 0
  %2146 = vmatpush1.bf16.msra.mxu0 %v2053
  %2147 = vmatprep.subr.bf16.mxu0 0
  %2148 = vmatpush1.bf16.msra.mxu0 %v2054
  %2149 = vmatprep.subr.bf16.mxu0 0
  %2150 = vmatpush1.bf16.msra.mxu0 %v2055
  %2151 = vmatprep.subr.bf16.mxu0 0
  %2152 = vmatpush1.bf16.msra.mxu0 %v2056
  %2153 = vmatprep.mubr.bf16.mxu0 %v1790
  %2154 = vmatmul.mubr.bf16.gmra.mrb[0].mxu0 %v1789
  %v2155 = vpop.f32.mrb[0].mxu0
  %v2156 = vadd.f32 %v1879, %v2155
  %v2157 = vpop.f32.mrb[0].mxu0
  %v2158 = vpop.f32.mrb[0].mxu0
  %v2159 = vpop.f32.mrb[0].mxu0
  %2160 = vdwg.mxu0
  %2161 = vmatprep.subr.bf16.mxu0 0
  %2162 = vmatpush1.bf16.msra.mxu0 %v2057
  %2163 = vmatprep.subr.bf16.mxu0 0
  %2164 = vmatpush1.bf16.msra.mxu0 %v2058
  %2165 = vmatprep.subr.bf16.mxu0 0
  %2166 = vmatpush1.bf16.msra.mxu0 %v2059
  %2167 = vmatprep.subr.bf16.mxu0 0
  %2168 = vmatpush1.bf16.msra.mxu0 %v2060
  %2169 = vmatprep.subr.bf16.mxu0 0
  %2170 = vmatpush1.bf16.msra.mxu0 %v2061
  %2171 = vmatprep.subr.bf16.mxu0 0
  %2172 = vmatpush1.bf16.msra.mxu0 %v2062
  %2173 = vmatprep.subr.bf16.mxu0 0
  %2174 = vmatpush1.bf16.msra.mxu0 %v2063
  %2175 = vmatprep.subr.bf16.mxu0 0
  %2176 = vmatpush1.bf16.msra.mxu0 %v2064
  %2177 = vmatprep.subr.bf16.mxu0 0
  %2178 = vmatpush1.bf16.msra.mxu0 %v2065
  %2179 = vmatprep.subr.bf16.mxu0 0
  %2180 = vmatpush1.bf16.msra.mxu0 %v2066
  %2181 = vmatprep.subr.bf16.mxu0 0
  %2182 = vmatpush1.bf16.msra.mxu0 %v2067
  %2183 = vmatprep.subr.bf16.mxu0 0
  %2184 = vmatpush1.bf16.msra.mxu0 %v2068
  %2185 = vmatprep.subr.bf16.mxu0 0
  %2186 = vmatpush1.bf16.msra.mxu0 %v2069
  %2187 = vmatprep.subr.bf16.mxu0 0
  %2188 = vmatpush1.bf16.msra.mxu0 %v2070
  %2189 = vmatprep.subr.bf16.mxu0 0
  %2190 = vmatpush1.bf16.msra.mxu0 %v2071
  %2191 = vmatprep.subr.bf16.mxu0 0
  %2192 = vmatpush1.bf16.msra.mxu0 %v2072
  %2193 = vmatprep.mubr.bf16.mxu0 %v1792
  %2194 = vmatmul.mubr.bf16.gmra.mrb[0].mxu0 %v1791
  %v2195 = vpop.f32.mrb[0].mxu0
  %v2196 = vadd.f32 %v2156, %v2195
  %v2197 = vpop.f32.mrb[0].mxu0
  %v2198 = vpop.f32.mrb[0].mxu0
  %v2199 = vpop.f32.mrb[0].mxu0
  %2200 = vdwg.mxu0
  %2201 = vmatprep.subr.bf16.mxu0 0
  %2202 = vmatpush1.bf16.msra.mxu0 %v2073
  %2203 = vmatprep.subr.bf16.mxu0 0
  %2204 = vmatpush1.bf16.msra.mxu0 %v2074
  %2205 = vmatprep.subr.bf16.mxu0 0
  %2206 = vmatpush1.bf16.msra.mxu0 %v2075
  %2207 = vmatprep.subr.bf16.mxu0 0
  %2208 = vmatpush1.bf16.msra.mxu0 %v2076
  %2209 = vmatprep.subr.bf16.mxu0 0
  %2210 = vmatpush1.bf16.msra.mxu0 %v2077
  %2211 = vmatprep.subr.bf16.mxu0 0
  %2212 = vmatpush1.bf16.msra.mxu0 %v2078
  %2213 = vmatprep.subr.bf16.mxu0 0
  %2214 = vmatpush1.bf16.msra.mxu0 %v2079
  %2215 = vmatprep.subr.bf16.mxu0 0
  %2216 = vmatpush1.bf16.msra.mxu0 %v2080
  %2217 = vmatprep.subr.bf16.mxu0 0
  %2218 = vmatpush1.bf16.msra.mxu0 0
  %2219 = vmatprep.subr.bf16.mxu0 0
  %2220 = vmatpush1.bf16.msra.mxu0 0
  %2221 = vmatprep.subr.bf16.mxu0 0
  %2222 = vmatpush1.bf16.msra.mxu0 0
  %2223 = vmatprep.subr.bf16.mxu0 0
  %2224 = vmatpush1.bf16.msra.mxu0 0
  %2225 = vmatprep.subr.bf16.mxu0 0
  %2226 = vmatpush1.bf16.msra.mxu0 0
  %2227 = vmatprep.subr.bf16.mxu0 0
  %2228 = vmatpush1.bf16.msra.mxu0 0
  %2229 = vmatprep.subr.bf16.mxu0 0
  %2230 = vmatpush1.bf16.msra.mxu0 0
  %2231 = vmatprep.subr.bf16.mxu0 0
  %2232 = vmatpush1.bf16.msra.mxu0 0
  %2233 = vmatprep.mubr.bf16.mxu0 0
  %2234 = vmatmul.mubr.bf16.gmra.mrb[0].mxu0 %v1793
  %v2235 = vpop.f32.mrb[0].mxu0
  %v2236 = vadd.f32 %v2196, %v2235
  %v2237 = vpop.f32.mrb[0].mxu0
  %v2238 = vpop.f32.mrb[0].mxu0
  %v2239 = vpop.f32.mrb[0].mxu0
  %2240 = vdwg.mxu0
  %2241 = vst [vmem:[%s15] sm:$0xff] %v2236
  // Predicated region
  $region62: #{dann_forward.1} parent=0 // pred_check
    _
  $region63: #{dann_forward.1} parent=0 // pred_check_branch
    %2243 = sbr.rel (0) target = $region65
  $region64: #{dann_forward.1} parent=0 // pred_region
    _
  $region65: #{dann_forward.1} parent=0 // pred_fallthru
    _
  // Predicated region
  $region66: #{dann_forward.1} parent=0 // pred_check
    _
  $region67: #{dann_forward.1} parent=0 // pred_check_branch
    %2245 = sbr.rel (0) target = $region69
  $region68: #{dann_forward.1} parent=0 // pred_region
    _
  $region69: #{dann_forward.1} parent=0 // pred_fallthru
    _

</llo_original>
